<compile_context>
chip_gen: v7x
topology: tpu7x:2x2x1
jax: 0.10.0
libtpu: 0.0.40
codegen_flags: <defaults>
</compile_context>

<pallas_src>
import functools

import jax
import jax.numpy as jnp
from jax.experimental import pallas as pl
from jax.experimental.pallas import tpu as pltpu


def _make_kernel(num_layers: int, hidden_size: int, batch: int, t_blk: int):
    H = hidden_size
    G = 4 * H
    L = num_layers

    def lstm_cell(gates, c_prev):
        # PyTorch gate order: i, f, g, o.
        i_g = jax.nn.sigmoid(gates[:, 0 * H:1 * H])
        f_g = jax.nn.sigmoid(gates[:, 1 * H:2 * H])
        g_g = jnp.tanh(gates[:, 2 * H:3 * H])
        o_g = jax.nn.sigmoid(gates[:, 3 * H:4 * H])
        c_new = f_g * c_prev + i_g * g_g
        h_new = o_g * jnp.tanh(c_new)
        return h_new, c_new

    def kernel(*args):
        # inputs:  gx, w_hh0(HBM), [wf_l(HBM), b_l] for l=1..L-1
        # outputs: out, hidden, cell
        # scratch: w_hh0_vmem, [wf_vmem_l], dma_sem
        gx_ref = args[0]
        whh0_hbm = args[1]
        wf_hbm = [args[2 + 2 * i] for i in range(L - 1)]
        b_refs = [args[3 + 2 * i] for i in range(L - 1)]
        base = 2 + 2 * (L - 1)
        out_ref = args[base + 0]
        hid_ref = args[base + 1]
        cell_ref = args[base + 2]
        whh0_vmem = args[base + 3]
        wf_vmem = [args[base + 4 + i] for i in range(L - 1)]
        dma_sem = args[base + 4 + (L - 1)]

        tb = pl.program_id(0)

        @pl.when(tb == 0)
        def _init_state_and_load_weights():
            # Zero initial h/c state directly in the (VMEM-resident) output refs.
            hid_ref[...] = jnp.zeros_like(hid_ref)
            cell_ref[...] = jnp.zeros_like(cell_ref)
            # One-time DMA of bf16 weights into single-buffered VMEM scratch.
            copies = [pltpu.make_async_copy(whh0_hbm, whh0_vmem, dma_sem.at[0])]
            for i in range(L - 1):
                copies.append(
                    pltpu.make_async_copy(wf_hbm[i], wf_vmem[i], dma_sem.at[i + 1]))
            for c in copies:
                c.start()
            for c in copies:
                c.wait()

        # Resident weights (loaded once per grid block from persistent scratch).
        w_hh0 = whh0_vmem[...]                                   # (H, 4H) bf16
        w_fused = [wf_vmem[i][...] for i in range(L - 1)]        # (2H, 4H) bf16
        # Hoisted bias broadcast: once per grid block, not per time step.
        b_bc = [jnp.broadcast_to(b_refs[i][...], (batch, G)) for i in range(L - 1)]

        for t in range(t_blk):                                   # small, static, unrolled
            # Layer-0 input projection (incl. bias) was precomputed outside the
            # recurrence; only the recurrent matmul remains here.
            gx_t = gx_ref[:, t * G:(t + 1) * G]                  # (batch, 4H) f32
            h_prev = hid_ref[0]
            gates = gx_t + jnp.dot(h_prev.astype(jnp.bfloat16), w_hh0,
                                   preferred_element_type=jnp.float32)
            h_new, c_new = lstm_cell(gates, cell_ref[0])
            hid_ref[0] = h_new
            cell_ref[0] = c_new
            x = h_new

            for l in range(1, L):
                h_prev = hid_ref[l]
                # Fused input+recurrent matmul: [x, h_prev] @ [W_ih; W_hh].
                xh = jnp.concatenate([x, h_prev], axis=-1).astype(jnp.bfloat16)
                gates = jnp.dot(xh, w_fused[l - 1],
                                preferred_element_type=jnp.float32) + b_bc[l - 1]
                h_new, c_new = lstm_cell(gates, cell_ref[l])
                hid_ref[l] = h_new
                cell_ref[l] = c_new
                # TODO(synk): inter-layer dropout omitted (forward uses eval semantics).
                x = h_new

            # Batch-major, statically addressed store of this step's last-layer h.
            out_ref[:, t * H:(t + 1) * H] = x

    return kernel


@functools.partial(jax.jit, static_argnames=("hidden_size", "t_blk"))
def attn_encoder_forward(X, emb_table, layer_params, hidden_size, t_blk=4):
    """X: (batch, seq) int32.  Returns (outputs, (hidden, cell)) matching
    AttnEncoder.forward: outputs (batch, seq, H), hidden/cell (L, batch, H)."""
    batch, seq_len = X.shape
    L = len(layer_params)
    H = hidden_size
    G = 4 * H

    # Pick a time-block size that divides seq_len (keeps state semantics exact).
    t_blk = max(1, min(t_blk, seq_len))
    while seq_len % t_blk:
        t_blk -= 1
    n_blk = seq_len // t_blk

    # ---- XLA-side glue: embedding gather + ReLU + hoisted layer-0 projection ----
    w_ih0, w_hh0, b0 = layer_params[0]
    embs = jnp.take(emb_table, X, axis=0)                    # (B, S, E)
    x0 = jnp.maximum(embs, 0.0)                              # ReLU on embeddings
    gx0 = jnp.einsum("bse,eg->bsg",
                     x0.astype(jnp.bfloat16), w_ih0.astype(jnp.bfloat16),
                     preferred_element_type=jnp.float32) + b0   # (B, S, 4H) f32
    gx0_flat = gx0.reshape(batch, seq_len * G)               # contiguous -> free reshape

    # ---- Weight prep: bf16, fused [W_ih; W_hh] for layers >= 1 ----
    w_hh0_bf = w_hh0.astype(jnp.bfloat16)                    # (H, 4H)
    fused, biases = [], []
    for (w_ih, w_hh, b) in layer_params[1:]:
        fused.append(jnp.concatenate([w_ih, w_hh], axis=0).astype(jnp.bfloat16))
        biases.append(b.astype(jnp.float32))                 # (1, 4H)

    kernel = _make_kernel(L, H, batch, t_blk)

    in_specs = [pl.BlockSpec((batch, t_blk * G), lambda tb: (0, tb)),
                pl.BlockSpec(memory_space=pl.ANY)]           # w_hh0 stays in HBM
    args = [gx0_flat, w_hh0_bf]
    for wf, b in zip(fused, biases):
        in_specs.append(pl.BlockSpec(memory_space=pl.ANY))   # fused weight in HBM
        in_specs.append(pl.BlockSpec((1, G), lambda tb: (0, 0)))
        args.extend([wf, b])

    out_specs = [
        pl.BlockSpec((batch, t_blk * H), lambda tb: (0, tb)),      # outputs (flat time)
        pl.BlockSpec((L, batch, H), lambda tb: (0, 0, 0)),         # hidden (state)
        pl.BlockSpec((L, batch, H), lambda tb: (0, 0, 0)),         # cell   (state)
    ]
    out_shapes = [
        jax.ShapeDtypeStruct((batch, seq_len * H), jnp.float32),
        jax.ShapeDtypeStruct((L, batch, H), jnp.float32),
        jax.ShapeDtypeStruct((L, batch, H), jnp.float32),
    ]

    scratch_shapes = [pltpu.VMEM((H, G), jnp.bfloat16)]            # resident w_hh0
    scratch_shapes += [pltpu.VMEM((2 * H, G), jnp.bfloat16) for _ in range(L - 1)]
    scratch_shapes += [pltpu.SemaphoreType.DMA((L,))]

    grid_spec = pltpu.PrefetchScalarGridSpec(
        num_scalar_prefetch=0,
        grid=(n_blk,),
        in_specs=in_specs,
        out_specs=out_specs,
        scratch_shapes=scratch_shapes,
    )

    out_flat, hidden, cell = pl.pallas_call(
        kernel,
        grid_spec=grid_spec,
        out_shape=out_shapes,
        compiler_params=pltpu.CompilerParams(
            dimension_semantics=("arbitrary",),      # time recurrence is inherently serial
            vmem_limit_bytes=48 * 1024 * 1024),
    )(*args)

    outputs = out_flat.reshape(batch, seq_len, H)    # contiguous -> metadata-only
    return outputs, (hidden, cell)


def init_params(key, vocab_size, embedding_size, hidden_size, num_layers):
    """Deterministic synthetic parameters (shapes match nn.Embedding + stacked LSTM)."""
    keys = jax.random.split(key, 1 + 4 * num_layers)
    emb_table = jax.random.normal(keys[0], (vocab_size, embedding_size),
                                  dtype=jnp.float32)
    bound = 1.0 / jnp.sqrt(hidden_size)
    layer_params = []
    for l in range(num_layers):
        in_dim = embedding_size if l == 0 else hidden_size
        k_ih, k_hh, k_bih, k_bhh = keys[1 + 4 * l: 1 + 4 * (l + 1)]
        w_ih = jax.random.uniform(k_ih, (in_dim, 4 * hidden_size),
                                  minval=-bound, maxval=bound, dtype=jnp.float32)
        w_hh = jax.random.uniform(k_hh, (hidden_size, 4 * hidden_size),
                                  minval=-bound, maxval=bound, dtype=jnp.float32)
        b_ih = jax.random.uniform(k_bih, (1, 4 * hidden_size),
                                  minval=-bound, maxval=bound, dtype=jnp.float32)
        b_hh = jax.random.uniform(k_bhh, (1, 4 * hidden_size),
                                  minval=-bound, maxval=bound, dtype=jnp.float32)
        layer_params.append((w_ih, w_hh, b_ih + b_hh))
    return emb_table, layer_params


if __name__ == "__main__":
    vocab_size = 50
    embedding_size = 16
    hidden_size = 32
    num_layers = 2
    batch = 2
    seq_len = 8

    key = jax.random.PRNGKey(0)
    k_param, k_x = jax.random.split(key)
    emb_table, layer_params = init_params(
        k_param, vocab_size, embedding_size, hidden_size, num_layers)

    X = jax.random.randint(k_x, (batch, seq_len), 0, vocab_size, dtype=jnp.int32)

    outputs, (hidden, cell) = attn_encoder_forward(
        X, emb_table, layer_params, hidden_size=hidden_size, t_blk=4)
    jax.block_until_ready((outputs, hidden, cell))

    assert outputs.shape == (batch, seq_len, hidden_size)
    assert hidden.shape == (num_layers, batch, hidden_size)
    assert cell.shape == (num_layers, batch, hidden_size)
    assert bool(jnp.all(jnp.isfinite(outputs)))
    assert bool(jnp.all(jnp.isfinite(hidden)))
    assert bool(jnp.all(jnp.isfinite(cell)))
    print("KERNEL_OK")
</pallas_src>

<mosaic_0001>
module attributes {stable_mosaic.version = 11 : i64} {
  func.func @kernel(%arg0: i32, %arg1: memref<2x512xf32, #tpu.memory_space<vmem>>, %arg2: memref<32x128xbf16, #tpu.memory_space<any>>, %arg3: memref<64x128xbf16, #tpu.memory_space<any>>, %arg4: memref<1x128xf32, #tpu.memory_space<vmem>>, %arg5: memref<2x128xf32, #tpu.memory_space<vmem>>, %arg6: memref<2x2x32xf32, #tpu.memory_space<vmem>>, %arg7: memref<2x2x32xf32, #tpu.memory_space<vmem>>, %arg8: memref<32x128xbf16, #tpu.memory_space<vmem>>, %arg9: memref<64x128xbf16, #tpu.memory_space<vmem>>, %arg10: memref<2x!tpu.dma_semaphore, #tpu.memory_space<semaphore_mem>>) attributes {dimension_semantics = [#tpu.dimension_semantics<arbitrary>], iteration_bounds = array<i64: 2>, scalar_prefetch = 0 : i64, scratch_operands = 3 : i64, tpu.core_type = #tpu.core_type<tc>, window_params = [{transform_indices = @transform_0, window_bounds = array<i64: 2, 512>}, {}, {}, {pipeline_mode = #tpu.pipeline_mode<synchronous>, transform_indices = @transform_3, window_bounds = array<i64: 1, 128>}, {transform_indices = @transform_4, window_bounds = array<i64: 2, 128>}, {pipeline_mode = #tpu.pipeline_mode<synchronous>, transform_indices = @transform_5, window_bounds = array<i64: 2, 2, 32>}, {pipeline_mode = #tpu.pipeline_mode<synchronous>, transform_indices = @transform_6, window_bounds = array<i64: 2, 2, 32>}]} {
    %c0_i32 = arith.constant 0 : i32
    %0 = arith.cmpi eq, %arg0, %c0_i32 : i32
    %1 = arith.extui %0 : i1 to i32
    %c0_i32_0 = arith.constant 0 : i32
    %2 = arith.cmpi ne, %1, %c0_i32_0 : i32
    scf.if %2 {
      %cst_142 = arith.constant 0.000000e+00 : f32
      %324 = vector.broadcast %cst_142 : f32 to vector<2x2x32xf32>
      %c0_143 = arith.constant 0 : index
      %c0_144 = arith.constant 0 : index
      %c0_145 = arith.constant 0 : index
      %325 = vector.load %arg6[%c0_143, %c0_144, %c0_145] : memref<2x2x32xf32, #tpu.memory_space<vmem>>, vector<2x2x32xf32>
      tpu.vector_store %arg6[%c0_143, %c0_144, %c0_145], %324 {strides = array<i32>} : memref<2x2x32xf32, #tpu.memory_space<vmem>>, vector<2x2x32xf32>,
      %cst_146 = arith.constant 0.000000e+00 : f32
      %326 = vector.broadcast %cst_146 : f32 to vector<2x2x32xf32>
      %c0_147 = arith.constant 0 : index
      %c0_148 = arith.constant 0 : index
      %c0_149 = arith.constant 0 : index
      %327 = vector.load %arg7[%c0_147, %c0_148, %c0_149] : memref<2x2x32xf32, #tpu.memory_space<vmem>>, vector<2x2x32xf32>
      tpu.vector_store %arg7[%c0_147, %c0_148, %c0_149], %326 {strides = array<i32>} : memref<2x2x32xf32, #tpu.memory_space<vmem>>, vector<2x2x32xf32>,
      %c0_i32_150 = arith.constant 0 : i32
      %328 = tpu.memref_slice %arg10[%c0_i32_150] : memref<2x!tpu.dma_semaphore, #tpu.memory_space<semaphore_mem>> -> memref<1x!tpu.dma_semaphore, #tpu.memory_space<semaphore_mem>>
      %329 = tpu.memref_squeeze %328 : memref<1x!tpu.dma_semaphore, #tpu.memory_space<semaphore_mem>> -> memref<!tpu.dma_semaphore, #tpu.memory_space<semaphore_mem>>
      tpu.enqueue_dma source(%arg2 : memref<32x128xbf16, #tpu.memory_space<any>>) target(%arg8 : memref<32x128xbf16, #tpu.memory_space<vmem>>) target_semaphore(%329 : memref<!tpu.dma_semaphore, #tpu.memory_space<semaphore_mem>>)
      %c1_i32 = arith.constant 1 : i32
      %330 = tpu.memref_slice %arg10[%c1_i32] : memref<2x!tpu.dma_semaphore, #tpu.memory_space<semaphore_mem>> -> memref<1x!tpu.dma_semaphore, #tpu.memory_space<semaphore_mem>>
      %331 = tpu.memref_squeeze %330 : memref<1x!tpu.dma_semaphore, #tpu.memory_space<semaphore_mem>> -> memref<!tpu.dma_semaphore, #tpu.memory_space<semaphore_mem>>
      tpu.enqueue_dma source(%arg3 : memref<64x128xbf16, #tpu.memory_space<any>>) target(%arg9 : memref<64x128xbf16, #tpu.memory_space<vmem>>) target_semaphore(%331 : memref<!tpu.dma_semaphore, #tpu.memory_space<semaphore_mem>>)
      %c0_i32_151 = arith.constant 0 : i32
      %332 = tpu.memref_slice %arg10[%c0_i32_151] : memref<2x!tpu.dma_semaphore, #tpu.memory_space<semaphore_mem>> -> memref<1x!tpu.dma_semaphore, #tpu.memory_space<semaphore_mem>>
      %333 = tpu.memref_squeeze %332 : memref<1x!tpu.dma_semaphore, #tpu.memory_space<semaphore_mem>> -> memref<!tpu.dma_semaphore, #tpu.memory_space<semaphore_mem>>
      tpu.wait_dma2 semaphore(%333 : memref<!tpu.dma_semaphore, #tpu.memory_space<semaphore_mem>>) src(%arg2 : memref<32x128xbf16, #tpu.memory_space<any>>) dst(%arg8 : memref<32x128xbf16, #tpu.memory_space<vmem>>)
      %c1_i32_152 = arith.constant 1 : i32
      %334 = tpu.memref_slice %arg10[%c1_i32_152] : memref<2x!tpu.dma_semaphore, #tpu.memory_space<semaphore_mem>> -> memref<1x!tpu.dma_semaphore, #tpu.memory_space<semaphore_mem>>
      %335 = tpu.memref_squeeze %334 : memref<1x!tpu.dma_semaphore, #tpu.memory_space<semaphore_mem>> -> memref<!tpu.dma_semaphore, #tpu.memory_space<semaphore_mem>>
      tpu.wait_dma2 semaphore(%335 : memref<!tpu.dma_semaphore, #tpu.memory_space<semaphore_mem>>) src(%arg3 : memref<64x128xbf16, #tpu.memory_space<any>>) dst(%arg9 : memref<64x128xbf16, #tpu.memory_space<vmem>>)
    } else {
    }
    %c0 = arith.constant 0 : index
    %c0_1 = arith.constant 0 : index
    %3 = vector.load %arg8[%c0, %c0_1] : memref<32x128xbf16, #tpu.memory_space<vmem>>, vector<32x128xbf16>
    %c0_2 = arith.constant 0 : index
    %c0_3 = arith.constant 0 : index
    %4 = vector.load %arg9[%c0_2, %c0_3] : memref<64x128xbf16, #tpu.memory_space<vmem>>, vector<64x128xbf16>
    %c0_4 = arith.constant 0 : index
    %c0_5 = arith.constant 0 : index
    %5 = vector.load %arg4[%c0_4, %c0_5] : memref<1x128xf32, #tpu.memory_space<vmem>>, vector<1x128xf32>
    %6 = vector.shape_cast %5 : vector<1x128xf32> to vector<1x128xf32>
    %7 = vector.broadcast %6 : vector<1x128xf32> to vector<2x128xf32>
    %c0_6 = arith.constant 0 : index
    %c0_7 = arith.constant 0 : index
    %8 = vector.load %arg1[%c0_6, %c0_7] : memref<2x512xf32, #tpu.memory_space<vmem>>, vector<2x128xf32>
    %c0_8 = arith.constant 0 : index
    %c0_9 = arith.constant 0 : index
    %c0_10 = arith.constant 0 : index
    %9 = vector.load %arg6[%c0_8, %c0_9, %c0_10] : memref<2x2x32xf32, #tpu.memory_space<vmem>>, vector<1x2x32xf32>
    %10 = vector.shape_cast %9 : vector<1x2x32xf32> to vector<2x32xf32>
    %11 = arith.truncf %10 : vector<2x32xf32> to vector<2x32xbf16>
    %cst = arith.constant dense<0.000000e+00> : vector<2x128xf32>
    %12 = tpu.matmul %11, %3, %cst {dimension_numbers = #tpu.dot_dimension_numbers<[1], [0], [0], [1], [0, 0, 1, 1], [], []>} : vector<2x32xbf16>, vector<32x128xbf16>, vector<2x128xf32> -> vector<2x128xf32>
    %13 = arith.addf %8, %12 : vector<2x128xf32>
    %c0_11 = arith.constant 0 : index
    %c0_12 = arith.constant 0 : index
    %c0_13 = arith.constant 0 : index
    %14 = vector.load %arg7[%c0_11, %c0_12, %c0_13] : memref<2x2x32xf32, #tpu.memory_space<vmem>>, vector<1x2x32xf32>
    %15 = vector.shape_cast %14 : vector<1x2x32xf32> to vector<2x32xf32>
    %16 = vector.extract_strided_slice %13 {offsets = [0, 0], sizes = [2, 32], strides = [1, 1]} : vector<2x128xf32> to vector<2x32xf32>
    %17 = arith.negf %16 : vector<2x32xf32>
    %18 = math.exp %17 : vector<2x32xf32>
    %cst_14 = arith.constant 1.000000e+00 : f32
    %19 = vector.broadcast %cst_14 : f32 to vector<2x32xf32>
    %20 = arith.addf %19, %18 : vector<2x32xf32>
    %21 = arith.divf %19, %20 : vector<2x32xf32>
    %22 = vector.extract_strided_slice %13 {offsets = [0, 32], sizes = [2, 32], strides = [1, 1]} : vector<2x128xf32> to vector<2x32xf32>
    %23 = arith.negf %22 : vector<2x32xf32>
    %24 = math.exp %23 : vector<2x32xf32>
    %cst_15 = arith.constant 1.000000e+00 : f32
    %25 = vector.broadcast %cst_15 : f32 to vector<2x32xf32>
    %26 = arith.addf %25, %24 : vector<2x32xf32>
    %27 = arith.divf %25, %26 : vector<2x32xf32>
    %28 = vector.extract_strided_slice %13 {offsets = [0, 64], sizes = [2, 32], strides = [1, 1]} : vector<2x128xf32> to vector<2x32xf32>
    %29 = math.tanh %28 : vector<2x32xf32>
    %30 = vector.extract_strided_slice %13 {offsets = [0, 96], sizes = [2, 32], strides = [1, 1]} : vector<2x128xf32> to vector<2x32xf32>
    %31 = arith.negf %30 : vector<2x32xf32>
    %32 = math.exp %31 : vector<2x32xf32>
    %cst_16 = arith.constant 1.000000e+00 : f32
    %33 = vector.broadcast %cst_16 : f32 to vector<2x32xf32>
    %34 = arith.addf %33, %32 : vector<2x32xf32>
    %35 = arith.divf %33, %34 : vector<2x32xf32>
    %36 = arith.mulf %27, %15 : vector<2x32xf32>
    %37 = arith.mulf %21, %29 : vector<2x32xf32>
    %38 = arith.addf %36, %37 : vector<2x32xf32>
    %39 = math.tanh %38 : vector<2x32xf32>
    %40 = arith.mulf %35, %39 : vector<2x32xf32>
    %c0_17 = arith.constant 0 : index
    %c0_18 = arith.constant 0 : index
    %c0_19 = arith.constant 0 : index
    %41 = vector.load %arg6[%c0_17, %c0_18, %c0_19] : memref<2x2x32xf32, #tpu.memory_space<vmem>>, vector<1x2x32xf32>
    %42 = vector.shape_cast %41 : vector<1x2x32xf32> to vector<2x32xf32>
    %43 = vector.shape_cast %40 : vector<2x32xf32> to vector<1x2x32xf32>
    tpu.vector_store %arg6[%c0_17, %c0_18, %c0_19], %43 {strides = array<i32>} : memref<2x2x32xf32, #tpu.memory_space<vmem>>, vector<1x2x32xf32>,
    %c0_20 = arith.constant 0 : index
    %c0_21 = arith.constant 0 : index
    %c0_22 = arith.constant 0 : index
    %44 = vector.load %arg7[%c0_20, %c0_21, %c0_22] : memref<2x2x32xf32, #tpu.memory_space<vmem>>, vector<1x2x32xf32>
    %45 = vector.shape_cast %44 : vector<1x2x32xf32> to vector<2x32xf32>
    %46 = vector.shape_cast %38 : vector<2x32xf32> to vector<1x2x32xf32>
    tpu.vector_store %arg7[%c0_20, %c0_21, %c0_22], %46 {strides = array<i32>} : memref<2x2x32xf32, #tpu.memory_space<vmem>>, vector<1x2x32xf32>,
    %c1 = arith.constant 1 : index
    %c0_23 = arith.constant 0 : index
    %c0_24 = arith.constant 0 : index
    %47 = vector.load %arg6[%c1, %c0_23, %c0_24] : memref<2x2x32xf32, #tpu.memory_space<vmem>>, vector<1x2x32xf32>
    %48 = vector.shape_cast %47 : vector<1x2x32xf32> to vector<2x32xf32>
    %49 = tpu.concatenate %40, %48 in 1 : vector<2x32xf32>, vector<2x32xf32> -> vector<2x64xf32>
    %50 = arith.truncf %49 : vector<2x64xf32> to vector<2x64xbf16>
    %cst_25 = arith.constant dense<0.000000e+00> : vector<2x128xf32>
    %51 = tpu.matmul %50, %4, %cst_25 {dimension_numbers = #tpu.dot_dimension_numbers<[1], [0], [0], [1], [0, 0, 1, 1], [], []>} : vector<2x64xbf16>, vector<64x128xbf16>, vector<2x128xf32> -> vector<2x128xf32>
    %52 = arith.addf %51, %7 : vector<2x128xf32>
    %c1_26 = arith.constant 1 : index
    %c0_27 = arith.constant 0 : index
    %c0_28 = arith.constant 0 : index
    %53 = vector.load %arg7[%c1_26, %c0_27, %c0_28] : memref<2x2x32xf32, #tpu.memory_space<vmem>>, vector<1x2x32xf32>
    %54 = vector.shape_cast %53 : vector<1x2x32xf32> to vector<2x32xf32>
    %55 = vector.extract_strided_slice %52 {offsets = [0, 0], sizes = [2, 32], strides = [1, 1]} : vector<2x128xf32> to vector<2x32xf32>
    %56 = arith.negf %55 : vector<2x32xf32>
    %57 = math.exp %56 : vector<2x32xf32>
    %cst_29 = arith.constant 1.000000e+00 : f32
    %58 = vector.broadcast %cst_29 : f32 to vector<2x32xf32>
    %59 = arith.addf %58, %57 : vector<2x32xf32>
    %60 = arith.divf %58, %59 : vector<2x32xf32>
    %61 = vector.extract_strided_slice %52 {offsets = [0, 32], sizes = [2, 32], strides = [1, 1]} : vector<2x128xf32> to vector<2x32xf32>
    %62 = arith.negf %61 : vector<2x32xf32>
    %63 = math.exp %62 : vector<2x32xf32>
    %cst_30 = arith.constant 1.000000e+00 : f32
    %64 = vector.broadcast %cst_30 : f32 to vector<2x32xf32>
    %65 = arith.addf %64, %63 : vector<2x32xf32>
    %66 = arith.divf %64, %65 : vector<2x32xf32>
    %67 = vector.extract_strided_slice %52 {offsets = [0, 64], sizes = [2, 32], strides = [1, 1]} : vector<2x128xf32> to vector<2x32xf32>
    %68 = math.tanh %67 : vector<2x32xf32>
    %69 = vector.extract_strided_slice %52 {offsets = [0, 96], sizes = [2, 32], strides = [1, 1]} : vector<2x128xf32> to vector<2x32xf32>
    %70 = arith.negf %69 : vector<2x32xf32>
    %71 = math.exp %70 : vector<2x32xf32>
    %cst_31 = arith.constant 1.000000e+00 : f32
    %72 = vector.broadcast %cst_31 : f32 to vector<2x32xf32>
    %73 = arith.addf %72, %71 : vector<2x32xf32>
    %74 = arith.divf %72, %73 : vector<2x32xf32>
    %75 = arith.mulf %66, %54 : vector<2x32xf32>
    %76 = arith.mulf %60, %68 : vector<2x32xf32>
    %77 = arith.addf %75, %76 : vector<2x32xf32>
    %78 = math.tanh %77 : vector<2x32xf32>
    %79 = arith.mulf %74, %78 : vector<2x32xf32>
    %c1_32 = arith.constant 1 : index
    %c0_33 = arith.constant 0 : index
    %c0_34 = arith.constant 0 : index
    %80 = vector.load %arg6[%c1_32, %c0_33, %c0_34] : memref<2x2x32xf32, #tpu.memory_space<vmem>>, vector<1x2x32xf32>
    %81 = vector.shape_cast %80 : vector<1x2x32xf32> to vector<2x32xf32>
    %82 = vector.shape_cast %79 : vector<2x32xf32> to vector<1x2x32xf32>
    tpu.vector_store %arg6[%c1_32, %c0_33, %c0_34], %82 {strides = array<i32>} : memref<2x2x32xf32, #tpu.memory_space<vmem>>, vector<1x2x32xf32>,
    %c1_35 = arith.constant 1 : index
    %c0_36 = arith.constant 0 : index
    %c0_37 = arith.constant 0 : index
    %83 = vector.load %arg7[%c1_35, %c0_36, %c0_37] : memref<2x2x32xf32, #tpu.memory_space<vmem>>, vector<1x2x32xf32>
    %84 = vector.shape_cast %83 : vector<1x2x32xf32> to vector<2x32xf32>
    %85 = vector.shape_cast %77 : vector<2x32xf32> to vector<1x2x32xf32>
    tpu.vector_store %arg7[%c1_35, %c0_36, %c0_37], %85 {strides = array<i32>} : memref<2x2x32xf32, #tpu.memory_space<vmem>>, vector<1x2x32xf32>,
    %c0_38 = arith.constant 0 : index
    %c0_39 = arith.constant 0 : index
    %86 = vector.load %arg5[%c0_38, %c0_39] : memref<2x128xf32, #tpu.memory_space<vmem>>, vector<2x32xf32>
    tpu.vector_store %arg5[%c0_38, %c0_39], %79 {strides = array<i32>} : memref<2x128xf32, #tpu.memory_space<vmem>>, vector<2x32xf32>,
    %c0_40 = arith.constant 0 : index
    %c128 = arith.constant 128 : index
    %87 = vector.load %arg1[%c0_40, %c128] : memref<2x512xf32, #tpu.memory_space<vmem>>, vector<2x128xf32>
    %c0_41 = arith.constant 0 : index
    %c0_42 = arith.constant 0 : index
    %c0_43 = arith.constant 0 : index
    %88 = vector.load %arg6[%c0_41, %c0_42, %c0_43] : memref<2x2x32xf32, #tpu.memory_space<vmem>>, vector<1x2x32xf32>
    %89 = vector.shape_cast %88 : vector<1x2x32xf32> to vector<2x32xf32>
    %90 = arith.truncf %89 : vector<2x32xf32> to vector<2x32xbf16>
    %cst_44 = arith.constant dense<0.000000e+00> : vector<2x128xf32>
    %91 = tpu.matmul %90, %3, %cst_44 {dimension_numbers = #tpu.dot_dimension_numbers<[1], [0], [0], [1], [0, 0, 1, 1], [], []>} : vector<2x32xbf16>, vector<32x128xbf16>, vector<2x128xf32> -> vector<2x128xf32>
    %92 = arith.addf %87, %91 : vector<2x128xf32>
    %c0_45 = arith.constant 0 : index
    %c0_46 = arith.constant 0 : index
    %c0_47 = arith.constant 0 : index
    %93 = vector.load %arg7[%c0_45, %c0_46, %c0_47] : memref<2x2x32xf32, #tpu.memory_space<vmem>>, vector<1x2x32xf32>
    %94 = vector.shape_cast %93 : vector<1x2x32xf32> to vector<2x32xf32>
    %95 = vector.extract_strided_slice %92 {offsets = [0, 0], sizes = [2, 32], strides = [1, 1]} : vector<2x128xf32> to vector<2x32xf32>
    %96 = arith.negf %95 : vector<2x32xf32>
    %97 = math.exp %96 : vector<2x32xf32>
    %cst_48 = arith.constant 1.000000e+00 : f32
    %98 = vector.broadcast %cst_48 : f32 to vector<2x32xf32>
    %99 = arith.addf %98, %97 : vector<2x32xf32>
    %100 = arith.divf %98, %99 : vector<2x32xf32>
    %101 = vector.extract_strided_slice %92 {offsets = [0, 32], sizes = [2, 32], strides = [1, 1]} : vector<2x128xf32> to vector<2x32xf32>
    %102 = arith.negf %101 : vector<2x32xf32>
    %103 = math.exp %102 : vector<2x32xf32>
    %cst_49 = arith.constant 1.000000e+00 : f32
    %104 = vector.broadcast %cst_49 : f32 to vector<2x32xf32>
    %105 = arith.addf %104, %103 : vector<2x32xf32>
    %106 = arith.divf %104, %105 : vector<2x32xf32>
    %107 = vector.extract_strided_slice %92 {offsets = [0, 64], sizes = [2, 32], strides = [1, 1]} : vector<2x128xf32> to vector<2x32xf32>
    %108 = math.tanh %107 : vector<2x32xf32>
    %109 = vector.extract_strided_slice %92 {offsets = [0, 96], sizes = [2, 32], strides = [1, 1]} : vector<2x128xf32> to vector<2x32xf32>
    %110 = arith.negf %109 : vector<2x32xf32>
    %111 = math.exp %110 : vector<2x32xf32>
    %cst_50 = arith.constant 1.000000e+00 : f32
    %112 = vector.broadcast %cst_50 : f32 to vector<2x32xf32>
    %113 = arith.addf %112, %111 : vector<2x32xf32>
    %114 = arith.divf %112, %113 : vector<2x32xf32>
    %115 = arith.mulf %106, %94 : vector<2x32xf32>
    %116 = arith.mulf %100, %108 : vector<2x32xf32>
    %117 = arith.addf %115, %116 : vector<2x32xf32>
    %118 = math.tanh %117 : vector<2x32xf32>
    %119 = arith.mulf %114, %118 : vector<2x32xf32>
    %c0_51 = arith.constant 0 : index
    %c0_52 = arith.constant 0 : index
    %c0_53 = arith.constant 0 : index
    %120 = vector.load %arg6[%c0_51, %c0_52, %c0_53] : memref<2x2x32xf32, #tpu.memory_space<vmem>>, vector<1x2x32xf32>
    %121 = vector.shape_cast %120 : vector<1x2x32xf32> to vector<2x32xf32>
    %122 = vector.shape_cast %119 : vector<2x32xf32> to vector<1x2x32xf32>
    tpu.vector_store %arg6[%c0_51, %c0_52, %c0_53], %122 {strides = array<i32>} : memref<2x2x32xf32, #tpu.memory_space<vmem>>, vector<1x2x32xf32>,
    %c0_54 = arith.constant 0 : index
    %c0_55 = arith.constant 0 : index
    %c0_56 = arith.constant 0 : index
    %123 = vector.load %arg7[%c0_54, %c0_55, %c0_56] : memref<2x2x32xf32, #tpu.memory_space<vmem>>, vector<1x2x32xf32>
    %124 = vector.shape_cast %123 : vector<1x2x32xf32> to vector<2x32xf32>
    %125 = vector.shape_cast %117 : vector<2x32xf32> to vector<1x2x32xf32>
    tpu.vector_store %arg7[%c0_54, %c0_55, %c0_56], %125 {strides = array<i32>} : memref<2x2x32xf32, #tpu.memory_space<vmem>>, vector<1x2x32xf32>,
    %c1_57 = arith.constant 1 : index
    %c0_58 = arith.constant 0 : index
    %c0_59 = arith.constant 0 : index
    %126 = vector.load %arg6[%c1_57, %c0_58, %c0_59] : memref<2x2x32xf32, #tpu.memory_space<vmem>>, vector<1x2x32xf32>
    %127 = vector.shape_cast %126 : vector<1x2x32xf32> to vector<2x32xf32>
    %128 = tpu.concatenate %119, %127 in 1 : vector<2x32xf32>, vector<2x32xf32> -> vector<2x64xf32>
    %129 = arith.truncf %128 : vector<2x64xf32> to vector<2x64xbf16>
    %cst_60 = arith.constant dense<0.000000e+00> : vector<2x128xf32>
    %130 = tpu.matmul %129, %4, %cst_60 {dimension_numbers = #tpu.dot_dimension_numbers<[1], [0], [0], [1], [0, 0, 1, 1], [], []>} : vector<2x64xbf16>, vector<64x128xbf16>, vector<2x128xf32> -> vector<2x128xf32>
    %131 = arith.addf %130, %7 : vector<2x128xf32>
    %c1_61 = arith.constant 1 : index
    %c0_62 = arith.constant 0 : index
    %c0_63 = arith.constant 0 : index
    %132 = vector.load %arg7[%c1_61, %c0_62, %c0_63] : memref<2x2x32xf32, #tpu.memory_space<vmem>>, vector<1x2x32xf32>
    %133 = vector.shape_cast %132 : vector<1x2x32xf32> to vector<2x32xf32>
    %134 = vector.extract_strided_slice %131 {offsets = [0, 0], sizes = [2, 32], strides = [1, 1]} : vector<2x128xf32> to vector<2x32xf32>
    %135 = arith.negf %134 : vector<2x32xf32>
    %136 = math.exp %135 : vector<2x32xf32>
    %cst_64 = arith.constant 1.000000e+00 : f32
    %137 = vector.broadcast %cst_64 : f32 to vector<2x32xf32>
    %138 = arith.addf %137, %136 : vector<2x32xf32>
    %139 = arith.divf %137, %138 : vector<2x32xf32>
    %140 = vector.extract_strided_slice %131 {offsets = [0, 32], sizes = [2, 32], strides = [1, 1]} : vector<2x128xf32> to vector<2x32xf32>
    %141 = arith.negf %140 : vector<2x32xf32>
    %142 = math.exp %141 : vector<2x32xf32>
    %cst_65 = arith.constant 1.000000e+00 : f32
    %143 = vector.broadcast %cst_65 : f32 to vector<2x32xf32>
    %144 = arith.addf %143, %142 : vector<2x32xf32>
    %145 = arith.divf %143, %144 : vector<2x32xf32>
    %146 = vector.extract_strided_slice %131 {offsets = [0, 64], sizes = [2, 32], strides = [1, 1]} : vector<2x128xf32> to vector<2x32xf32>
    %147 = math.tanh %146 : vector<2x32xf32>
    %148 = vector.extract_strided_slice %131 {offsets = [0, 96], sizes = [2, 32], strides = [1, 1]} : vector<2x128xf32> to vector<2x32xf32>
    %149 = arith.negf %148 : vector<2x32xf32>
    %150 = math.exp %149 : vector<2x32xf32>
    %cst_66 = arith.constant 1.000000e+00 : f32
    %151 = vector.broadcast %cst_66 : f32 to vector<2x32xf32>
    %152 = arith.addf %151, %150 : vector<2x32xf32>
    %153 = arith.divf %151, %152 : vector<2x32xf32>
    %154 = arith.mulf %145, %133 : vector<2x32xf32>
    %155 = arith.mulf %139, %147 : vector<2x32xf32>
    %156 = arith.addf %154, %155 : vector<2x32xf32>
    %157 = math.tanh %156 : vector<2x32xf32>
    %158 = arith.mulf %153, %157 : vector<2x32xf32>
    %c1_67 = arith.constant 1 : index
    %c0_68 = arith.constant 0 : index
    %c0_69 = arith.constant 0 : index
    %159 = vector.load %arg6[%c1_67, %c0_68, %c0_69] : memref<2x2x32xf32, #tpu.memory_space<vmem>>, vector<1x2x32xf32>
    %160 = vector.shape_cast %159 : vector<1x2x32xf32> to vector<2x32xf32>
    %161 = vector.shape_cast %158 : vector<2x32xf32> to vector<1x2x32xf32>
    tpu.vector_store %arg6[%c1_67, %c0_68, %c0_69], %161 {strides = array<i32>} : memref<2x2x32xf32, #tpu.memory_space<vmem>>, vector<1x2x32xf32>,
    %c1_70 = arith.constant 1 : index
    %c0_71 = arith.constant 0 : index
    %c0_72 = arith.constant 0 : index
    %162 = vector.load %arg7[%c1_70, %c0_71, %c0_72] : memref<2x2x32xf32, #tpu.memory_space<vmem>>, vector<1x2x32xf32>
    %163 = vector.shape_cast %162 : vector<1x2x32xf32> to vector<2x32xf32>
    %164 = vector.shape_cast %156 : vector<2x32xf32> to vector<1x2x32xf32>
    tpu.vector_store %arg7[%c1_70, %c0_71, %c0_72], %164 {strides = array<i32>} : memref<2x2x32xf32, #tpu.memory_space<vmem>>, vector<1x2x32xf32>,
    %c0_73 = arith.constant 0 : index
    %c32 = arith.constant 32 : index
    %165 = vector.load %arg5[%c0_73, %c32] : memref<2x128xf32, #tpu.memory_space<vmem>>, vector<2x32xf32>
    tpu.vector_store %arg5[%c0_73, %c32], %158 {strides = array<i32>} : memref<2x128xf32, #tpu.memory_space<vmem>>, vector<2x32xf32>,
    %c0_74 = arith.constant 0 : index
    %c256 = arith.constant 256 : index
    %166 = vector.load %arg1[%c0_74, %c256] : memref<2x512xf32, #tpu.memory_space<vmem>>, vector<2x128xf32>
    %c0_75 = arith.constant 0 : index
    %c0_76 = arith.constant 0 : index
    %c0_77 = arith.constant 0 : index
    %167 = vector.load %arg6[%c0_75, %c0_76, %c0_77] : memref<2x2x32xf32, #tpu.memory_space<vmem>>, vector<1x2x32xf32>
    %168 = vector.shape_cast %167 : vector<1x2x32xf32> to vector<2x32xf32>
    %169 = arith.truncf %168 : vector<2x32xf32> to vector<2x32xbf16>
    %cst_78 = arith.constant dense<0.000000e+00> : vector<2x128xf32>
    %170 = tpu.matmul %169, %3, %cst_78 {dimension_numbers = #tpu.dot_dimension_numbers<[1], [0], [0], [1], [0, 0, 1, 1], [], []>} : vector<2x32xbf16>, vector<32x128xbf16>, vector<2x128xf32> -> vector<2x128xf32>
    %171 = arith.addf %166, %170 : vector<2x128xf32>
    %c0_79 = arith.constant 0 : index
    %c0_80 = arith.constant 0 : index
    %c0_81 = arith.constant 0 : index
    %172 = vector.load %arg7[%c0_79, %c0_80, %c0_81] : memref<2x2x32xf32, #tpu.memory_space<vmem>>, vector<1x2x32xf32>
    %173 = vector.shape_cast %172 : vector<1x2x32xf32> to vector<2x32xf32>
    %174 = vector.extract_strided_slice %171 {offsets = [0, 0], sizes = [2, 32], strides = [1, 1]} : vector<2x128xf32> to vector<2x32xf32>
    %175 = arith.negf %174 : vector<2x32xf32>
    %176 = math.exp %175 : vector<2x32xf32>
    %cst_82 = arith.constant 1.000000e+00 : f32
    %177 = vector.broadcast %cst_82 : f32 to vector<2x32xf32>
    %178 = arith.addf %177, %176 : vector<2x32xf32>
    %179 = arith.divf %177, %178 : vector<2x32xf32>
    %180 = vector.extract_strided_slice %171 {offsets = [0, 32], sizes = [2, 32], strides = [1, 1]} : vector<2x128xf32> to vector<2x32xf32>
    %181 = arith.negf %180 : vector<2x32xf32>
    %182 = math.exp %181 : vector<2x32xf32>
    %cst_83 = arith.constant 1.000000e+00 : f32
    %183 = vector.broadcast %cst_83 : f32 to vector<2x32xf32>
    %184 = arith.addf %183, %182 : vector<2x32xf32>
    %185 = arith.divf %183, %184 : vector<2x32xf32>
    %186 = vector.extract_strided_slice %171 {offsets = [0, 64], sizes = [2, 32], strides = [1, 1]} : vector<2x128xf32> to vector<2x32xf32>
    %187 = math.tanh %186 : vector<2x32xf32>
    %188 = vector.extract_strided_slice %171 {offsets = [0, 96], sizes = [2, 32], strides = [1, 1]} : vector<2x128xf32> to vector<2x32xf32>
    %189 = arith.negf %188 : vector<2x32xf32>
    %190 = math.exp %189 : vector<2x32xf32>
    %cst_84 = arith.constant 1.000000e+00 : f32
    %191 = vector.broadcast %cst_84 : f32 to vector<2x32xf32>
    %192 = arith.addf %191, %190 : vector<2x32xf32>
    %193 = arith.divf %191, %192 : vector<2x32xf32>
    %194 = arith.mulf %185, %173 : vector<2x32xf32>
    %195 = arith.mulf %179, %187 : vector<2x32xf32>
    %196 = arith.addf %194, %195 : vector<2x32xf32>
    %197 = math.tanh %196 : vector<2x32xf32>
    %198 = arith.mulf %193, %197 : vector<2x32xf32>
    %c0_85 = arith.constant 0 : index
    %c0_86 = arith.constant 0 : index
    %c0_87 = arith.constant 0 : index
    %199 = vector.load %arg6[%c0_85, %c0_86, %c0_87] : memref<2x2x32xf32, #tpu.memory_space<vmem>>, vector<1x2x32xf32>
    %200 = vector.shape_cast %199 : vector<1x2x32xf32> to vector<2x32xf32>
    %201 = vector.shape_cast %198 : vector<2x32xf32> to vector<1x2x32xf32>
    tpu.vector_store %arg6[%c0_85, %c0_86, %c0_87], %201 {strides = array<i32>} : memref<2x2x32xf32, #tpu.memory_space<vmem>>, vector<1x2x32xf32>,
    %c0_88 = arith.constant 0 : index
    %c0_89 = arith.constant 0 : index
    %c0_90 = arith.constant 0 : index
    %202 = vector.load %arg7[%c0_88, %c0_89, %c0_90] : memref<2x2x32xf32, #tpu.memory_space<vmem>>, vector<1x2x32xf32>
    %203 = vector.shape_cast %202 : vector<1x2x32xf32> to vector<2x32xf32>
    %204 = vector.shape_cast %196 : vector<2x32xf32> to vector<1x2x32xf32>
    tpu.vector_store %arg7[%c0_88, %c0_89, %c0_90], %204 {strides = array<i32>} : memref<2x2x32xf32, #tpu.memory_space<vmem>>, vector<1x2x32xf32>,
    %c1_91 = arith.constant 1 : index
    %c0_92 = arith.constant 0 : index
    %c0_93 = arith.constant 0 : index
    %205 = vector.load %arg6[%c1_91, %c0_92, %c0_93] : memref<2x2x32xf32, #tpu.memory_space<vmem>>, vector<1x2x32xf32>
    %206 = vector.shape_cast %205 : vector<1x2x32xf32> to vector<2x32xf32>
    %207 = tpu.concatenate %198, %206 in 1 : vector<2x32xf32>, vector<2x32xf32> -> vector<2x64xf32>
    %208 = arith.truncf %207 : vector<2x64xf32> to vector<2x64xbf16>
    %cst_94 = arith.constant dense<0.000000e+00> : vector<2x128xf32>
    %209 = tpu.matmul %208, %4, %cst_94 {dimension_numbers = #tpu.dot_dimension_numbers<[1], [0], [0], [1], [0, 0, 1, 1], [], []>} : vector<2x64xbf16>, vector<64x128xbf16>, vector<2x128xf32> -> vector<2x128xf32>
    %210 = arith.addf %209, %7 : vector<2x128xf32>
    %c1_95 = arith.constant 1 : index
    %c0_96 = arith.constant 0 : index
    %c0_97 = arith.constant 0 : index
    %211 = vector.load %arg7[%c1_95, %c0_96, %c0_97] : memref<2x2x32xf32, #tpu.memory_space<vmem>>, vector<1x2x32xf32>
    %212 = vector.shape_cast %211 : vector<1x2x32xf32> to vector<2x32xf32>
    %213 = vector.extract_strided_slice %210 {offsets = [0, 0], sizes = [2, 32], strides = [1, 1]} : vector<2x128xf32> to vector<2x32xf32>
    %214 = arith.negf %213 : vector<2x32xf32>
    %215 = math.exp %214 : vector<2x32xf32>
    %cst_98 = arith.constant 1.000000e+00 : f32
    %216 = vector.broadcast %cst_98 : f32 to vector<2x32xf32>
    %217 = arith.addf %216, %215 : vector<2x32xf32>
    %218 = arith.divf %216, %217 : vector<2x32xf32>
    %219 = vector.extract_strided_slice %210 {offsets = [0, 32], sizes = [2, 32], strides = [1, 1]} : vector<2x128xf32> to vector<2x32xf32>
    %220 = arith.negf %219 : vector<2x32xf32>
    %221 = math.exp %220 : vector<2x32xf32>
    %cst_99 = arith.constant 1.000000e+00 : f32
    %222 = vector.broadcast %cst_99 : f32 to vector<2x32xf32>
    %223 = arith.addf %222, %221 : vector<2x32xf32>
    %224 = arith.divf %222, %223 : vector<2x32xf32>
    %225 = vector.extract_strided_slice %210 {offsets = [0, 64], sizes = [2, 32], strides = [1, 1]} : vector<2x128xf32> to vector<2x32xf32>
    %226 = math.tanh %225 : vector<2x32xf32>
    %227 = vector.extract_strided_slice %210 {offsets = [0, 96], sizes = [2, 32], strides = [1, 1]} : vector<2x128xf32> to vector<2x32xf32>
    %228 = arith.negf %227 : vector<2x32xf32>
    %229 = math.exp %228 : vector<2x32xf32>
    %cst_100 = arith.constant 1.000000e+00 : f32
    %230 = vector.broadcast %cst_100 : f32 to vector<2x32xf32>
    %231 = arith.addf %230, %229 : vector<2x32xf32>
    %232 = arith.divf %230, %231 : vector<2x32xf32>
    %233 = arith.mulf %224, %212 : vector<2x32xf32>
    %234 = arith.mulf %218, %226 : vector<2x32xf32>
    %235 = arith.addf %233, %234 : vector<2x32xf32>
    %236 = math.tanh %235 : vector<2x32xf32>
    %237 = arith.mulf %232, %236 : vector<2x32xf32>
    %c1_101 = arith.constant 1 : index
    %c0_102 = arith.constant 0 : index
    %c0_103 = arith.constant 0 : index
    %238 = vector.load %arg6[%c1_101, %c0_102, %c0_103] : memref<2x2x32xf32, #tpu.memory_space<vmem>>, vector<1x2x32xf32>
    %239 = vector.shape_cast %238 : vector<1x2x32xf32> to vector<2x32xf32>
    %240 = vector.shape_cast %237 : vector<2x32xf32> to vector<1x2x32xf32>
    tpu.vector_store %arg6[%c1_101, %c0_102, %c0_103], %240 {strides = array<i32>} : memref<2x2x32xf32, #tpu.memory_space<vmem>>, vector<1x2x32xf32>,
    %c1_104 = arith.constant 1 : index
    %c0_105 = arith.constant 0 : index
    %c0_106 = arith.constant 0 : index
    %241 = vector.load %arg7[%c1_104, %c0_105, %c0_106] : memref<2x2x32xf32, #tpu.memory_space<vmem>>, vector<1x2x32xf32>
    %242 = vector.shape_cast %241 : vector<1x2x32xf32> to vector<2x32xf32>
    %243 = vector.shape_cast %235 : vector<2x32xf32> to vector<1x2x32xf32>
    tpu.vector_store %arg7[%c1_104, %c0_105, %c0_106], %243 {strides = array<i32>} : memref<2x2x32xf32, #tpu.memory_space<vmem>>, vector<1x2x32xf32>,
    %c0_107 = arith.constant 0 : index
    %c64 = arith.constant 64 : index
    %244 = vector.load %arg5[%c0_107, %c64] : memref<2x128xf32, #tpu.memory_space<vmem>>, vector<2x32xf32>
    tpu.vector_store %arg5[%c0_107, %c64], %237 {strides = array<i32>} : memref<2x128xf32, #tpu.memory_space<vmem>>, vector<2x32xf32>,
    %c0_108 = arith.constant 0 : index
    %c384 = arith.constant 384 : index
    %245 = vector.load %arg1[%c0_108, %c384] : memref<2x512xf32, #tpu.memory_space<vmem>>, vector<2x128xf32>
    %c0_109 = arith.constant 0 : index
    %c0_110 = arith.constant 0 : index
    %c0_111 = arith.constant 0 : index
    %246 = vector.load %arg6[%c0_109, %c0_110, %c0_111] : memref<2x2x32xf32, #tpu.memory_space<vmem>>, vector<1x2x32xf32>
    %247 = vector.shape_cast %246 : vector<1x2x32xf32> to vector<2x32xf32>
    %248 = arith.truncf %247 : vector<2x32xf32> to vector<2x32xbf16>
    %cst_112 = arith.constant dense<0.000000e+00> : vector<2x128xf32>
    %249 = tpu.matmul %248, %3, %cst_112 {dimension_numbers = #tpu.dot_dimension_numbers<[1], [0], [0], [1], [0, 0, 1, 1], [], []>} : vector<2x32xbf16>, vector<32x128xbf16>, vector<2x128xf32> -> vector<2x128xf32>
    %250 = arith.addf %245, %249 : vector<2x128xf32>
    %c0_113 = arith.constant 0 : index
    %c0_114 = arith.constant 0 : index
    %c0_115 = arith.constant 0 : index
    %251 = vector.load %arg7[%c0_113, %c0_114, %c0_115] : memref<2x2x32xf32, #tpu.memory_space<vmem>>, vector<1x2x32xf32>
    %252 = vector.shape_cast %251 : vector<1x2x32xf32> to vector<2x32xf32>
    %253 = vector.extract_strided_slice %250 {offsets = [0, 0], sizes = [2, 32], strides = [1, 1]} : vector<2x128xf32> to vector<2x32xf32>
    %254 = arith.negf %253 : vector<2x32xf32>
    %255 = math.exp %254 : vector<2x32xf32>
    %cst_116 = arith.constant 1.000000e+00 : f32
    %256 = vector.broadcast %cst_116 : f32 to vector<2x32xf32>
    %257 = arith.addf %256, %255 : vector<2x32xf32>
    %258 = arith.divf %256, %257 : vector<2x32xf32>
    %259 = vector.extract_strided_slice %250 {offsets = [0, 32], sizes = [2, 32], strides = [1, 1]} : vector<2x128xf32> to vector<2x32xf32>
    %260 = arith.negf %259 : vector<2x32xf32>
    %261 = math.exp %260 : vector<2x32xf32>
    %cst_117 = arith.constant 1.000000e+00 : f32
    %262 = vector.broadcast %cst_117 : f32 to vector<2x32xf32>
    %263 = arith.addf %262, %261 : vector<2x32xf32>
    %264 = arith.divf %262, %263 : vector<2x32xf32>
    %265 = vector.extract_strided_slice %250 {offsets = [0, 64], sizes = [2, 32], strides = [1, 1]} : vector<2x128xf32> to vector<2x32xf32>
    %266 = math.tanh %265 : vector<2x32xf32>
    %267 = vector.extract_strided_slice %250 {offsets = [0, 96], sizes = [2, 32], strides = [1, 1]} : vector<2x128xf32> to vector<2x32xf32>
    %268 = arith.negf %267 : vector<2x32xf32>
    %269 = math.exp %268 : vector<2x32xf32>
    %cst_118 = arith.constant 1.000000e+00 : f32
    %270 = vector.broadcast %cst_118 : f32 to vector<2x32xf32>
    %271 = arith.addf %270, %269 : vector<2x32xf32>
    %272 = arith.divf %270, %271 : vector<2x32xf32>
    %273 = arith.mulf %264, %252 : vector<2x32xf32>
    %274 = arith.mulf %258, %266 : vector<2x32xf32>
    %275 = arith.addf %273, %274 : vector<2x32xf32>
    %276 = math.tanh %275 : vector<2x32xf32>
    %277 = arith.mulf %272, %276 : vector<2x32xf32>
    %c0_119 = arith.constant 0 : index
    %c0_120 = arith.constant 0 : index
    %c0_121 = arith.constant 0 : index
    %278 = vector.load %arg6[%c0_119, %c0_120, %c0_121] : memref<2x2x32xf32, #tpu.memory_space<vmem>>, vector<1x2x32xf32>
    %279 = vector.shape_cast %278 : vector<1x2x32xf32> to vector<2x32xf32>
    %280 = vector.shape_cast %277 : vector<2x32xf32> to vector<1x2x32xf32>
    tpu.vector_store %arg6[%c0_119, %c0_120, %c0_121], %280 {strides = array<i32>} : memref<2x2x32xf32, #tpu.memory_space<vmem>>, vector<1x2x32xf32>,
    %c0_122 = arith.constant 0 : index
    %c0_123 = arith.constant 0 : index
    %c0_124 = arith.constant 0 : index
    %281 = vector.load %arg7[%c0_122, %c0_123, %c0_124] : memref<2x2x32xf32, #tpu.memory_space<vmem>>, vector<1x2x32xf32>
    %282 = vector.shape_cast %281 : vector<1x2x32xf32> to vector<2x32xf32>
    %283 = vector.shape_cast %275 : vector<2x32xf32> to vector<1x2x32xf32>
    tpu.vector_store %arg7[%c0_122, %c0_123, %c0_124], %283 {strides = array<i32>} : memref<2x2x32xf32, #tpu.memory_space<vmem>>, vector<1x2x32xf32>,
    %c1_125 = arith.constant 1 : index
    %c0_126 = arith.constant 0 : index
    %c0_127 = arith.constant 0 : index
    %284 = vector.load %arg6[%c1_125, %c0_126, %c0_127] : memref<2x2x32xf32, #tpu.memory_space<vmem>>, vector<1x2x32xf32>
    %285 = vector.shape_cast %284 : vector<1x2x32xf32> to vector<2x32xf32>
    %286 = tpu.concatenate %277, %285 in 1 : vector<2x32xf32>, vector<2x32xf32> -> vector<2x64xf32>
    %287 = arith.truncf %286 : vector<2x64xf32> to vector<2x64xbf16>
    %cst_128 = arith.constant dense<0.000000e+00> : vector<2x128xf32>
    %288 = tpu.matmul %287, %4, %cst_128 {dimension_numbers = #tpu.dot_dimension_numbers<[1], [0], [0], [1], [0, 0, 1, 1], [], []>} : vector<2x64xbf16>, vector<64x128xbf16>, vector<2x128xf32> -> vector<2x128xf32>
    %289 = arith.addf %288, %7 : vector<2x128xf32>
    %c1_129 = arith.constant 1 : index
    %c0_130 = arith.constant 0 : index
    %c0_131 = arith.constant 0 : index
    %290 = vector.load %arg7[%c1_129, %c0_130, %c0_131] : memref<2x2x32xf32, #tpu.memory_space<vmem>>, vector<1x2x32xf32>
    %291 = vector.shape_cast %290 : vector<1x2x32xf32> to vector<2x32xf32>
    %292 = vector.extract_strided_slice %289 {offsets = [0, 0], sizes = [2, 32], strides = [1, 1]} : vector<2x128xf32> to vector<2x32xf32>
    %293 = arith.negf %292 : vector<2x32xf32>
    %294 = math.exp %293 : vector<2x32xf32>
    %cst_132 = arith.constant 1.000000e+00 : f32
    %295 = vector.broadcast %cst_132 : f32 to vector<2x32xf32>
    %296 = arith.addf %295, %294 : vector<2x32xf32>
    %297 = arith.divf %295, %296 : vector<2x32xf32>
    %298 = vector.extract_strided_slice %289 {offsets = [0, 32], sizes = [2, 32], strides = [1, 1]} : vector<2x128xf32> to vector<2x32xf32>
    %299 = arith.negf %298 : vector<2x32xf32>
    %300 = math.exp %299 : vector<2x32xf32>
    %cst_133 = arith.constant 1.000000e+00 : f32
    %301 = vector.broadcast %cst_133 : f32 to vector<2x32xf32>
    %302 = arith.addf %301, %300 : vector<2x32xf32>
    %303 = arith.divf %301, %302 : vector<2x32xf32>
    %304 = vector.extract_strided_slice %289 {offsets = [0, 64], sizes = [2, 32], strides = [1, 1]} : vector<2x128xf32> to vector<2x32xf32>
    %305 = math.tanh %304 : vector<2x32xf32>
    %306 = vector.extract_strided_slice %289 {offsets = [0, 96], sizes = [2, 32], strides = [1, 1]} : vector<2x128xf32> to vector<2x32xf32>
    %307 = arith.negf %306 : vector<2x32xf32>
    %308 = math.exp %307 : vector<2x32xf32>
    %cst_134 = arith.constant 1.000000e+00 : f32
    %309 = vector.broadcast %cst_134 : f32 to vector<2x32xf32>
    %310 = arith.addf %309, %308 : vector<2x32xf32>
    %311 = arith.divf %309, %310 : vector<2x32xf32>
    %312 = arith.mulf %303, %291 : vector<2x32xf32>
    %313 = arith.mulf %297, %305 : vector<2x32xf32>
    %314 = arith.addf %312, %313 : vector<2x32xf32>
    %315 = math.tanh %314 : vector<2x32xf32>
    %316 = arith.mulf %311, %315 : vector<2x32xf32>
    %c1_135 = arith.constant 1 : index
    %c0_136 = arith.constant 0 : index
    %c0_137 = arith.constant 0 : index
    %317 = vector.load %arg6[%c1_135, %c0_136, %c0_137] : memref<2x2x32xf32, #tpu.memory_space<vmem>>, vector<1x2x32xf32>
    %318 = vector.shape_cast %317 : vector<1x2x32xf32> to vector<2x32xf32>
    %319 = vector.shape_cast %316 : vector<2x32xf32> to vector<1x2x32xf32>
    tpu.vector_store %arg6[%c1_135, %c0_136, %c0_137], %319 {strides = array<i32>} : memref<2x2x32xf32, #tpu.memory_space<vmem>>, vector<1x2x32xf32>,
    %c1_138 = arith.constant 1 : index
    %c0_139 = arith.constant 0 : index
    %c0_140 = arith.constant 0 : index
    %320 = vector.load %arg7[%c1_138, %c0_139, %c0_140] : memref<2x2x32xf32, #tpu.memory_space<vmem>>, vector<1x2x32xf32>
    %321 = vector.shape_cast %320 : vector<1x2x32xf32> to vector<2x32xf32>
    %322 = vector.shape_cast %314 : vector<2x32xf32> to vector<1x2x32xf32>
    tpu.vector_store %arg7[%c1_138, %c0_139, %c0_140], %322 {strides = array<i32>} : memref<2x2x32xf32, #tpu.memory_space<vmem>>, vector<1x2x32xf32>,
    %c0_141 = arith.constant 0 : index
    %c96 = arith.constant 96 : index
    %323 = vector.load %arg5[%c0_141, %c96] : memref<2x128xf32, #tpu.memory_space<vmem>>, vector<2x32xf32>
    tpu.vector_store %arg5[%c0_141, %c96], %316 {strides = array<i32>} : memref<2x128xf32, #tpu.memory_space<vmem>>, vector<2x32xf32>,
    return
  }
  func.func @transform_0(%arg0: i32) -> (i32, i32) {
    %c0_i32 = arith.constant 0 : i32
    %c0_i32_0 = arith.constant 0 : i32
    return %c0_i32, %arg0 : i32, i32
  }
  func.func @transform_3(%arg0: i32) -> (i32, i32) {
    %c0_i32 = arith.constant 0 : i32
    %c0_i32_0 = arith.constant 0 : i32
    %c0_i32_1 = arith.constant 0 : i32
    return %c0_i32, %c0_i32_0 : i32, i32
  }
  func.func @transform_4(%arg0: i32) -> (i32, i32) {
    %c0_i32 = arith.constant 0 : i32
    %c0_i32_0 = arith.constant 0 : i32
    return %c0_i32, %arg0 : i32, i32
  }
  func.func @transform_5(%arg0: i32) -> (i32, i32, i32) {
    %c0_i32 = arith.constant 0 : i32
    %c0_i32_0 = arith.constant 0 : i32
    %c0_i32_1 = arith.constant 0 : i32
    %c0_i32_2 = arith.constant 0 : i32
    return %c0_i32, %c0_i32_0, %c0_i32_1 : i32, i32, i32
  }
  func.func @transform_6(%arg0: i32) -> (i32, i32, i32) {
    %c0_i32 = arith.constant 0 : i32
    %c0_i32_0 = arith.constant 0 : i32
    %c0_i32_1 = arith.constant 0 : i32
    %c0_i32_2 = arith.constant 0 : i32
    return %c0_i32, %c0_i32_0, %c0_i32_1 : i32, i32, i32
  }
}

</mosaic_0001>

<llo_original>
// kernel: attn_encoder_forward.1
$region0: #{attn_encoder_forward.1}
  #allocation0 [shape = 'u32[]', space=smem, size = 0x4, offset = 0x4, fixed_abs, tag = 'smem constant byte address 0x4 - core index']
  #allocation1 [shape = 'u32[144,128]{1,0:T(1,128)}', space=vmem, size = 0x12000, scoped, tag = 'internal scratch']
  #allocation2 [shape = 'bf16[32,128]{1,0:T(16,128)(2,1)}', space=vmem, size = 0x2000, scoped, tag = 'scratch operand']
  #allocation3 [shape = 'bf16[64,128]{1,0:T(16,128)(2,1)}', space=vmem, size = 0x4000, scoped, tag = 'scratch operand']
  #allocation4 [shape = 's32[2]{0}', space=sflag, size = 0x8, scoped, tag = 'scratch operand']
  #allocation9 [shape = 's32[]', space=sflag, size = 0x4, offset = 0, fixed_abs, tag = 'sflag constant byte address 0x0 - dummy sync flag']
  #allocation10 [shape = 's32[]', space=sflag, size = 0x4, offset = 0, fixed_abs, tag = 'sflag constant byte address 0x0 - dummy sync flag']
  %s0 = inlined_call_operand.vmem [shape: f32[2,1024], index: 0, kind: input, shape index: {}]
  %s1 = inlined_call_operand.vmem [shape: bf16[32,128], index: 1, kind: input, shape index: {}]
  %s2 = inlined_call_operand.vmem [shape: bf16[64,128], index: 2, kind: input, shape index: {}]
  %s3 = inlined_call_operand.vmem [shape: f32[1,128], index: 3, kind: input, shape index: {}]
  %s4 = inlined_call_operand.vmem [shape: f32[2,256], index: 4, kind: output, shape index: {0}]
  %s5 = inlined_call_operand.hbm [shape: f32[2,2,32], index: 5, kind: output, shape index: {1}]
  %s6 = inlined_call_operand.hbm [shape: f32[2,2,32], index: 6, kind: output, shape index: {2}]
  %7 = xla_tuple %s4, %s5, %s6
  %s8 = sld [smem:[#allocation0]]
  $region129: #{attn_encoder_forward.1} parent=0
    _
  %s10 = ssub.s32 1, %s8
  %s11 = scalar_select 0, %s10, %s8
  $region1: #{attn_encoder_forward.1} parent=0
    #allocation5 [shape = 'u8[2048]{0}', space=vmem, size = 0x800, scoped, tag = 'output window, operand 1, single buffered']
    #allocation6 [shape = 's32[2]{0}', space=sflag, size = 0x8, scoped, tag = 'scoped memory for attn_encoder_forward.1']
    #allocation7 [shape = 'u8[2048]{0}', space=vmem, size = 0x800, scoped, tag = 'output window, operand 2, single buffered']
    #allocation8 [shape = 's32[1]{0}', space=sflag, size = 0x4, scoped, tag = 'scoped memory for attn_encoder_forward.1']
    %12 = vsyncpa [#allocation6], 0
    %13 = vsyncpa [#allocation8], 0
    loop: start=0, step=1, limit=4
    $region2: #{attn_encoder_forward.1} parent=1 // loop_pre_header
      _
    $region3: #{attn_encoder_forward.1} parent=1 // loop_header
      %s15 = sphi 0, %s19
      %p16 = scmp.ge.s32.totalorder %s15, 4
      %s25 = sphi 0, %s27
      %s28 = sphi 0, %s25
      %s29 = sphi 0, %s28
      %s45 = sphi 0, %s29
      %s49 = sphi 0, %s49
      %s51 = sphi 0, %s49
      %s52 = sphi 0, %s51
      %s66 = sphi 0, %s52
      %s72 = sphi 0, %s74
      %s75 = sphi 0, %s72
      %s76 = sphi 0, %s75
      %s92 = sphi 0, %s76
      %s96 = sphi 0, %s96
      %s98 = sphi 0, %s96
      %s99 = sphi 0, %s98
      %s113 = sphi 0, %s99
      %s117 = sphi 0, %s117
      %s119 = sphi 0, %s117
      %s120 = sphi 0, %s119
      %s134 = sphi 0, %s120
    $region4: #{attn_encoder_forward.1} parent=1 // loop_header_branch
      %18 = sbr.rel (%p16) target = $region8
    $region5: #{attn_encoder_forward.1} parent=1 // loop_body
      %s20 = ssub.s32 %s15, 1
      %s21 = ssub.s32 %s15, 2
      %s22 = sadd.s32 %s15, 1
      %s23 = ssub.s32 %s15, %s22
      %p24 = scmp.eq.s32.totalorder %s23, 0
      %s26 = sadd.s32 %s25, 1
      %s27 = scalar_select %p24, %s25, %s26
      %p30 = pneg %p24
      %p31 = scmp.eq.s32.totalorder %s15, 1
      %p32 = por %p30, %p31
      %p33 = scmp.ne.s32.totalorder %s25, %s28
      %p34 = scmp.eq.s32.totalorder %s15, 0
      %p35 = por %p33, %p34
      %p36 = scmp.ne.s32.totalorder %s25, %s28
      %p37 = scmp.eq.s32.totalorder %s20, 1
      %p38 = por %p36, %p37
      %p39 = scmp.ne.s32.totalorder %s28, %s29
      %p40 = scmp.eq.s32.totalorder %s20, 0
      %p41 = por %p39, %p40
      %p42 = scmp.ne.s32.totalorder %s28, %s29
      %p43 = scmp.eq.s32.totalorder %s21, 1
      %p44 = por %p42, %p43
      %p46 = scmp.ne.s32.totalorder %s29, %s45
      %p47 = scmp.eq.s32.totalorder %s21, 0
      %p48 = por %p46, %p47
      %s50 = sadd.s32 %s49, 1
      %p53 = scmp.eq.s32.totalorder %s15, 1
      %p54 = scmp.ne.s32.totalorder %s49, %s51
      %p55 = scmp.eq.s32.totalorder %s15, 0
      %p56 = por %p54, %p55
      %p57 = scmp.ne.s32.totalorder %s49, %s51
      %p58 = scmp.eq.s32.totalorder %s20, 1
      %p59 = por %p57, %p58
      %p60 = scmp.ne.s32.totalorder %s51, %s52
      %p61 = scmp.eq.s32.totalorder %s20, 0
      %p62 = por %p60, %p61
      %p63 = scmp.ne.s32.totalorder %s51, %s52
      %p64 = scmp.eq.s32.totalorder %s21, 1
      %p65 = por %p63, %p64
      %p67 = scmp.ne.s32.totalorder %s52, %s66
      %p68 = scmp.eq.s32.totalorder %s21, 0
      %p69 = por %p67, %p68
      %s70 = ssub.s32 %s15, %s22
      %p71 = scmp.eq.s32.totalorder %s70, 0
      %s73 = sadd.s32 %s72, 1
      %s74 = scalar_select %p71, %s72, %s73
      %p77 = pneg %p71
      %p78 = scmp.eq.s32.totalorder %s15, 1
      %p79 = por %p77, %p78
      %p80 = scmp.ne.s32.totalorder %s72, %s75
      %p81 = scmp.eq.s32.totalorder %s15, 0
      %p82 = por %p80, %p81
      %p83 = scmp.ne.s32.totalorder %s72, %s75
      %p84 = scmp.eq.s32.totalorder %s20, 1
      %p85 = por %p83, %p84
      %p86 = scmp.ne.s32.totalorder %s75, %s76
      %p87 = scmp.eq.s32.totalorder %s20, 0
      %p88 = por %p86, %p87
      %p89 = scmp.ne.s32.totalorder %s75, %s76
      %p90 = scmp.eq.s32.totalorder %s21, 1
      %p91 = por %p89, %p90
      %p93 = scmp.ne.s32.totalorder %s76, %s92
      %p94 = scmp.eq.s32.totalorder %s21, 0
      %p95 = por %p93, %p94
      %s97 = sadd.s32 %s96, 1
      %p100 = scmp.eq.s32.totalorder %s15, 1
      %p101 = scmp.ne.s32.totalorder %s96, %s98
      %p102 = scmp.eq.s32.totalorder %s15, 0
      %p103 = por %p101, %p102
      %p104 = scmp.ne.s32.totalorder %s96, %s98
      %p105 = scmp.eq.s32.totalorder %s20, 1
      %p106 = por %p104, %p105
      %p107 = scmp.ne.s32.totalorder %s98, %s99
      %p108 = scmp.eq.s32.totalorder %s20, 0
      %p109 = por %p107, %p108
      %p110 = scmp.ne.s32.totalorder %s98, %s99
      %p111 = scmp.eq.s32.totalorder %s21, 1
      %p112 = por %p110, %p111
      %p114 = scmp.ne.s32.totalorder %s99, %s113
      %p115 = scmp.eq.s32.totalorder %s21, 0
      %p116 = por %p114, %p115
      %s118 = sadd.s32 %s117, 1
      %p121 = scmp.eq.s32.totalorder %s15, 1
      %p122 = scmp.ne.s32.totalorder %s117, %s119
      %p123 = scmp.eq.s32.totalorder %s15, 0
      %p124 = por %p122, %p123
      %p125 = scmp.ne.s32.totalorder %s117, %s119
      %p126 = scmp.eq.s32.totalorder %s20, 1
      %p127 = por %p125, %p126
      %p128 = scmp.ne.s32.totalorder %s119, %s120
      %p129 = scmp.eq.s32.totalorder %s20, 0
      %p130 = por %p128, %p129
      %p131 = scmp.ne.s32.totalorder %s119, %s120
      %p132 = scmp.eq.s32.totalorder %s21, 1
      %p133 = por %p131, %p132
      %p135 = scmp.ne.s32.totalorder %s120, %s134
      %p136 = scmp.eq.s32.totalorder %s21, 0
      %p137 = por %p135, %p136
      %p138 = scmp.le.s32.totalorder 1, %s15
      %p139 = scmp.lt.s32.totalorder %s15, 3
      %p140 = pnand %p138, %p139
      %p141 = pneg %p140
      // Predicated region
      $region9: #{attn_encoder_forward.1} parent=5 // pred_check
        _
      $region10: #{attn_encoder_forward.1} parent=5 // pred_check_branch
        %143 = sbr.rel (%p140) target = $region12
      $region11: #{attn_encoder_forward.1} parent=5 // pred_region
        %s144 = ssub.s32 %s15, 1
        // Predicated region
        $region13: #{attn_encoder_forward.1} parent=11 // pred_check
          %p145 = pneg %p62
        $region14: #{attn_encoder_forward.1} parent=11 // pred_check_branch
          %147 = sbr.rel (%p145) target = $region16
        $region15: #{attn_encoder_forward.1} parent=11 // pred_region
          _
        $region16: #{attn_encoder_forward.1} parent=11 // pred_fallthru
          _
      $region12: #{attn_encoder_forward.1} parent=5 // pred_fallthru
        _
      %p148 = scmp.lt.s32.totalorder %s15, 2
      // Predicated region
      $region17: #{attn_encoder_forward.1} parent=5 // pred_check
        %p149 = pneg %p148
      $region18: #{attn_encoder_forward.1} parent=5 // pred_check_branch
        %151 = sbr.rel (%p149) target = $region20
      $region19: #{attn_encoder_forward.1} parent=5 // pred_region
        // Predicated region
        $region21: #{attn_encoder_forward.1} parent=19 // pred_check
          %p152 = pneg %p35
        $region22: #{attn_encoder_forward.1} parent=19 // pred_check_branch
          %154 = sbr.rel (%p152) target = $region24
        $region23: #{attn_encoder_forward.1} parent=19 // pred_region
          %s155 = smul.u32 4, %s15
          %p156 = scmp.lt.s32.totalorder %s155, 7
          %s157 = scalar_select %p156, %s155, 7
          %s158 = smul.addr %s157, 2
          %s159 = scalar_lea.vmem %s0, %s158
          %s160 = smul.u32 4, %s15
        $region24: #{attn_encoder_forward.1} parent=19 // pred_fallthru
          _
      $region20: #{attn_encoder_forward.1} parent=5 // pred_fallthru
        _
      %p161 = scmp.le.s32.totalorder 1, %s15
      %p162 = scmp.lt.s32.totalorder %s15, 3
      %p163 = pnand %p161, %p162
      %p164 = pneg %p163
      // Predicated region
      $region25: #{attn_encoder_forward.1} parent=5 // pred_check
        _
      $region26: #{attn_encoder_forward.1} parent=5 // pred_check_branch
        %166 = sbr.rel (%p163) target = $region28
      $region27: #{attn_encoder_forward.1} parent=5 // pred_region
        %s167 = ssub.s32 %s15, 1
        %s168 = smul.u32 4, %s20
        %p169 = scmp.lt.s32.totalorder %s168, 7
        %s170 = scalar_select %p169, %s168, 7
        %s171 = smul.addr %s170, 2
        %s172 = scalar_lea.vmem %s0, %s171
        %p173 = pneg %p41
        %p174 = pneg %p38
        %p175 = pneg %p62
        %p176 = pneg %p59
        %p177 = pneg %p88
        %p178 = pneg %p85
        %p179 = scmp.lt.s32.totalorder %s20, 1
        %s180 = scalar_select %p179, %s20, 1
        %s181 = smul.addr %s180, 2
        %s182 = scalar_lea.vmem %s4, %s181
        %p183 = pneg %p109
        %p184 = pneg %p106
        %p185 = pneg %p130
        %p186 = pneg %p127
        %s187 = smul.u32 4, %s20
        %p188 = scmp.lt.s32.totalorder %s187, 7
        %s189 = scalar_select %p188, %s187, 7
        %s190 = smul.addr %s189, 2
        %s191 = scalar_lea.vmem %s0, %s190
        %s192 = smul.u32 4, %s20
        %p193 = scmp.lt.s32.totalorder %s20, 1
        %s194 = scalar_select %p193, %s20, 1
        %s195 = smul.addr %s194, 2
        %s196 = scalar_lea.vmem %s4, %s195
        %p198 = scmp.eq.s32.totalorder %s20, 0
        // Predicated region
        $region29: #{attn_encoder_forward.1} parent=27 // pred_check
          %p199 = pneg %p198
        $region30: #{attn_encoder_forward.1} parent=27 // pred_check_branch
          %201 = sbr.rel (%p199) target = $region32
        $region31: #{attn_encoder_forward.1} parent=27 // pred_region
          %vm202 = vcmask 254976
          %203 = vst.msk [vmem:[#allocation5] sm:$0x3] %vm202, 0.0
          %204 = vst.msk [vmem:[#allocation5 + $0x2] sm:$0x3] %vm202, 0.0
          %205 = vst.msk [vmem:[#allocation7] sm:$0x3] %vm202, 0.0
          %206 = vst.msk [vmem:[#allocation7 + $0x2] sm:$0x3] %vm202, 0.0
          %p208 = scmp.lt.u32.totalorder 16, 8
          %p209 = pneg %p208
          // Predicated region
          $region33: #{attn_encoder_forward.1} parent=31 // pred_check
            _
          $region34: #{attn_encoder_forward.1} parent=31 // pred_check_branch
            %211 = sbr.rel (%p208) target = $region36
          $region35: #{attn_encoder_forward.1} parent=31 // pred_region
            %s226 = sand.u32 16, 7
            %p227 = scmp.eq.s32.totalorder %s226, 0
            // Predicated region
            $region48: #{attn_encoder_forward.1} parent=35 // pred_check
              %p228 = pneg %p227
            $region49: #{attn_encoder_forward.1} parent=35 // pred_check_branch
              %230 = sbr.rel (%p228) target = $region51
            $region50: #{attn_encoder_forward.1} parent=35 // pred_region
              loop: start=0, step=1, limit=1
              $region52: #{attn_encoder_forward.1} parent=50 // loop_pre_header
                _
              $region53: #{attn_encoder_forward.1} parent=50 // loop_header
                %s232 = sphi 0, %s236
                %p233 = scmp.ge.s32.totalorder %s232, 1
                %s237 = sphi %s1, %s1
                %s238 = sphi [#allocation2], [#allocation2]
              $region54: #{attn_encoder_forward.1} parent=50 // loop_header_branch
                %235 = sbr.rel (%p233) target = $region58
              $region55: #{attn_encoder_forward.1} parent=50 // loop_body
                %v239 = vld [vmem:[%s237] sm:$0xff]
                %240 = vst [vmem:[%s238] sm:$0xff] %v239
                %v241 = vld [vmem:[%s237 + $0x8] sm:$0xff]
                %242 = vst [vmem:[%s238 + $0x8] sm:$0xff] %v241
              $region56: #{attn_encoder_forward.1} parent=50 // loop_footer
                %s236 = sadd.s32 1, %s232
              $region57: #{attn_encoder_forward.1} parent=50 // loop_footer_branch
                %231 = sbr.rel target = $region53
              $region58: #{attn_encoder_forward.1} parent=50 // loop_exit
                _
            $region51: #{attn_encoder_forward.1} parent=35 // pred_fallthru
              _
            %p243 = pneg %p227
            // Predicated region
            $region59: #{attn_encoder_forward.1} parent=35 // pred_check
              _
            $region60: #{attn_encoder_forward.1} parent=35 // pred_check_branch
              %245 = sbr.rel (%p227) target = $region62
            $region61: #{attn_encoder_forward.1} parent=35 // pred_region
              %s246 = sand.u32 16, 7
            $region62: #{attn_encoder_forward.1} parent=35 // pred_fallthru
              _
          $region36: #{attn_encoder_forward.1} parent=31 // pred_fallthru
            _
          // Predicated region
          $region37: #{attn_encoder_forward.1} parent=31 // pred_check
            %p212 = pneg %p208
          $region38: #{attn_encoder_forward.1} parent=31 // pred_check_branch
            %214 = sbr.rel (%p212) target = $region40
          $region39: #{attn_encoder_forward.1} parent=31 // pred_region
            %s215 = sshllo.u32 0, 16
            loop: start=0, step=1, limit=1
            $region41: #{attn_encoder_forward.1} parent=39 // loop_pre_header
              _
            $region42: #{attn_encoder_forward.1} parent=39 // loop_header
              %s217 = sphi 0, %s221
              %p218 = scmp.ge.s32.totalorder %s217, 1
              %s222 = sphi %s1, %s1
              %s223 = sphi [#allocation2], [#allocation2]
            $region43: #{attn_encoder_forward.1} parent=39 // loop_header_branch
              %220 = sbr.rel (%p218) target = $region47
            $region44: #{attn_encoder_forward.1} parent=39 // loop_body
              %v224 = vld [vmem:[%s222] sm:%s215]
              %225 = vst [vmem:[%s223] sm:%s215] %v224
            $region45: #{attn_encoder_forward.1} parent=39 // loop_footer
              %s221 = sadd.s32 1, %s217
            $region46: #{attn_encoder_forward.1} parent=39 // loop_footer_branch
              %216 = sbr.rel target = $region42
            $region47: #{attn_encoder_forward.1} parent=39 // loop_exit
              _
          $region40: #{attn_encoder_forward.1} parent=31 // pred_fallthru
            _
          // Predicated region
          $region63: #{attn_encoder_forward.1} parent=31 // pred_check
            _
          $region64: #{attn_encoder_forward.1} parent=31 // pred_check_branch
            %249 = sbr.rel (0) target = $region66
          $region65: #{attn_encoder_forward.1} parent=31 // pred_region
            %250 = vsyncadd [#allocation4], 256
          $region66: #{attn_encoder_forward.1} parent=31 // pred_fallthru
            _
          %s251 = scalar_lea.sflag [#allocation4], 1
          %p253 = scmp.lt.u32.totalorder 32, 8
          %p254 = pneg %p253
          // Predicated region
          $region67: #{attn_encoder_forward.1} parent=31 // pred_check
            _
          $region68: #{attn_encoder_forward.1} parent=31 // pred_check_branch
            %256 = sbr.rel (%p253) target = $region70
          $region69: #{attn_encoder_forward.1} parent=31 // pred_region
            %s271 = sand.u32 32, 7
            %p272 = scmp.eq.s32.totalorder %s271, 0
            // Predicated region
            $region82: #{attn_encoder_forward.1} parent=69 // pred_check
              %p273 = pneg %p272
            $region83: #{attn_encoder_forward.1} parent=69 // pred_check_branch
              %275 = sbr.rel (%p273) target = $region85
            $region84: #{attn_encoder_forward.1} parent=69 // pred_region
              loop: start=0, step=1, limit=1
              $region86: #{attn_encoder_forward.1} parent=84 // loop_pre_header
                _
              $region87: #{attn_encoder_forward.1} parent=84 // loop_header
                %s277 = sphi 0, %s281
                %p278 = scmp.ge.s32.totalorder %s277, 1
                %s282 = sphi %s2, %s2
                %s283 = sphi [#allocation3], [#allocation3]
              $region88: #{attn_encoder_forward.1} parent=84 // loop_header_branch
                %280 = sbr.rel (%p278) target = $region92
              $region89: #{attn_encoder_forward.1} parent=84 // loop_body
                %v284 = vld [vmem:[%s282] sm:$0xff]
                %285 = vst [vmem:[%s283] sm:$0xff] %v284
                %v286 = vld [vmem:[%s282 + $0x8] sm:$0xff]
                %287 = vst [vmem:[%s283 + $0x8] sm:$0xff] %v286
                %v288 = vld [vmem:[%s282 + $0x10] sm:$0xff]
                %289 = vst [vmem:[%s283 + $0x10] sm:$0xff] %v288
                %v290 = vld [vmem:[%s282 + $0x18] sm:$0xff]
                %291 = vst [vmem:[%s283 + $0x18] sm:$0xff] %v290
              $region90: #{attn_encoder_forward.1} parent=84 // loop_footer
                %s281 = sadd.s32 1, %s277
              $region91: #{attn_encoder_forward.1} parent=84 // loop_footer_branch
                %276 = sbr.rel target = $region87
              $region92: #{attn_encoder_forward.1} parent=84 // loop_exit
                _
            $region85: #{attn_encoder_forward.1} parent=69 // pred_fallthru
              _
            %p292 = pneg %p272
            // Predicated region
            $region93: #{attn_encoder_forward.1} parent=69 // pred_check
              _
            $region94: #{attn_encoder_forward.1} parent=69 // pred_check_branch
              %294 = sbr.rel (%p272) target = $region96
            $region95: #{attn_encoder_forward.1} parent=69 // pred_region
              %s295 = sand.u32 32, 7
            $region96: #{attn_encoder_forward.1} parent=69 // pred_fallthru
              _
          $region70: #{attn_encoder_forward.1} parent=31 // pred_fallthru
            _
          // Predicated region
          $region71: #{attn_encoder_forward.1} parent=31 // pred_check
            %p257 = pneg %p253
          $region72: #{attn_encoder_forward.1} parent=31 // pred_check_branch
            %259 = sbr.rel (%p257) target = $region74
          $region73: #{attn_encoder_forward.1} parent=31 // pred_region
            %s260 = sshllo.u32 0, 32
            loop: start=0, step=1, limit=1
            $region75: #{attn_encoder_forward.1} parent=73 // loop_pre_header
              _
            $region76: #{attn_encoder_forward.1} parent=73 // loop_header
              %s262 = sphi 0, %s266
              %p263 = scmp.ge.s32.totalorder %s262, 1
              %s267 = sphi %s2, %s2
              %s268 = sphi [#allocation3], [#allocation3]
            $region77: #{attn_encoder_forward.1} parent=73 // loop_header_branch
              %265 = sbr.rel (%p263) target = $region81
            $region78: #{attn_encoder_forward.1} parent=73 // loop_body
              %v269 = vld [vmem:[%s267] sm:%s260]
              %270 = vst [vmem:[%s268] sm:%s260] %v269
            $region79: #{attn_encoder_forward.1} parent=73 // loop_footer
              %s266 = sadd.s32 1, %s262
            $region80: #{attn_encoder_forward.1} parent=73 // loop_footer_branch
              %261 = sbr.rel target = $region76
            $region81: #{attn_encoder_forward.1} parent=73 // loop_exit
              _
          $region74: #{attn_encoder_forward.1} parent=31 // pred_fallthru
            _
          // Predicated region
          $region97: #{attn_encoder_forward.1} parent=31 // pred_check
            _
          $region98: #{attn_encoder_forward.1} parent=31 // pred_check_branch
            %298 = sbr.rel (0) target = $region100
          $region99: #{attn_encoder_forward.1} parent=31 // pred_region
            %299 = vsyncadd %s251, 512
          $region100: #{attn_encoder_forward.1} parent=31 // pred_fallthru
            _
          %s300 = smul.u32 4, 4
          %s301 = smul.u32 %s300, 1
          %s302 = sshll.u32 %s301, 4
          %303 = dma.done [#allocation4], %s302
          %s304 = smul.u32 4, 8
          %s305 = smul.u32 %s304, 1
          %s306 = sshll.u32 %s305, 4
          %307 = dma.done %s251, %s306
        $region32: #{attn_encoder_forward.1} parent=27 // pred_fallthru
          _
        %v308 = vld [vmem:[#allocation2] sm:$0xff]
        %v309 = vld [vmem:[#allocation2 + $0x8] sm:$0xff]
        %v310 = vld [vmem:[#allocation3] sm:$0xff]
        %v311 = vld [vmem:[#allocation3 + $0x8] sm:$0xff]
        %v312 = vld [vmem:[#allocation3 + $0x10] sm:$0xff]
        %v313 = vld [vmem:[#allocation3 + $0x18] sm:$0xff]
        %v314 = vld [vmem:[%s3] sm:$0x1]
        %v316 = vlaneseq
        %v317 = vshrl.u32 %v316, 7
        %v318 = vsub.s32 0, %v317
        %v319 = vrot.slane %v314, %v318
        %v321 = vld [vmem:[%s191] sm:$0x3]
        %v322 = vld [vmem:[#allocation5] sm:$0x3]
        %v323 = vpack.c.bf16 %v322, %v322
        %vm324 = vcmask 261120
        %v326 = vsel %vm324, %v323, 0
        %328 = vmatprep.subr.bf16.mxu0 0
        %329 = vmatpush1.bf16.msra.mxu0 %v308
        %330 = vmatprep.subr.bf16.mxu0 0
        %331 = vmatpush1.bf16.msra.mxu0 %v309
        %332 = vmatprep.subr.bf16.mxu0 0
        %333 = vmatpush1.bf16.msra.mxu0 0
        %334 = vmatprep.subr.bf16.mxu0 0
        %335 = vmatpush1.bf16.msra.mxu0 0
        %336 = vmatprep.subr.bf16.mxu0 0
        %337 = vmatpush1.bf16.msra.mxu0 0
        %338 = vmatprep.subr.bf16.mxu0 0
        %339 = vmatpush1.bf16.msra.mxu0 0
        %340 = vmatprep.subr.bf16.mxu0 0
        %341 = vmatpush1.bf16.msra.mxu0 0
        %342 = vmatprep.subr.bf16.mxu0 0
        %343 = vmatpush1.bf16.msra.mxu0 0
        %344 = vmatprep.subr.bf16.mxu0 0
        %345 = vmatpush1.bf16.msra.mxu0 0
        %346 = vmatprep.subr.bf16.mxu0 0
        %347 = vmatpush1.bf16.msra.mxu0 0
        %348 = vmatprep.subr.bf16.mxu0 0
        %349 = vmatpush1.bf16.msra.mxu0 0
        %350 = vmatprep.subr.bf16.mxu0 0
        %351 = vmatpush1.bf16.msra.mxu0 0
        %352 = vmatprep.subr.bf16.mxu0 0
        %353 = vmatpush1.bf16.msra.mxu0 0
        %354 = vmatprep.subr.bf16.mxu0 0
        %355 = vmatpush1.bf16.msra.mxu0 0
        %356 = vmatprep.subr.bf16.mxu0 0
        %357 = vmatpush1.bf16.msra.mxu0 0
        %358 = vmatprep.subr.bf16.mxu0 0
        %359 = vmatpush1.bf16.msra.mxu0 0
        %360 = vmatprep.mubr.bf16.mxu0 0
        %361 = vmatmul.mubr.bf16.gmra.mrb[0].mxu0 %v326
        %v362 = vpop.f32.mrb[0].mxu0
        %v363 = vadd.f32 0.0, %v362
        %v364 = vpop.f32.mrb[0].mxu0
        %v365 = vpop.f32.mrb[0].mxu0
        %v366 = vpop.f32.mrb[0].mxu0
        %367 = vdwg.mxu0
        %v368 = vadd.f32 %v321, %v363
        %v369 = vld [vmem:[#allocation7] sm:$0x3]
        %v370 = vxor.u32 %v368, 2147483648
        %v371 = vmul.f32 %v370, 1.442695
        %v372 = vpow.pop %v371
        %v373 = vadd.f32 %v372, 1.0
        %v374 = vrcp.pop %v373
        %v375 = vmul.f32 1.0, %v374
        %v376 = vtanh.pop %v368
        %v379 = vunpack.c.l.s4 1983009808
        %v380 = vunpack.c.0.s8 %v379
        %v381 = vlaneseq
        %v382 = vshrl.u32 %v381, 7
        %v383 = vsub.s32 %v380, %v382
        %v384 = vrot.slane %v369, %v383
        %385 = vrot.lane.b32.xlu0 %v384, 32
        %v386 = vpop.permute.xlu0 %385
        %v388 = vmul.f32 %v375, %v386
        %390 = vrot.lane.b32.xlu0 %v376, 64
        %v391 = vpop.permute.xlu0 %390
        %v393 = vmul.f32 %v375, %v391
        %395 = vrot.lane.b32.xlu0 %v393, 32
        %v396 = vpop.permute.xlu0 %395
        %v398 = vadd.f32 %v388, %v396
        %v399 = vtanh.pop %v398
        %401 = vrot.lane.b32.xlu0 %v399, 64
        %v402 = vpop.permute.xlu0 %401
        %v404 = vmul.f32 %v375, %v402
        %v407 = vunpack.c.l.s4 1983009808
        %v408 = vunpack.c.0.s8 %v407
        %v409 = vlaneseq
        %v410 = vshrl.u32 %v409, 7
        %v411 = vsub.s32 %v408, %v410
        %v412 = vrot.slane %v404, %v411
        %413 = vrot.lane.b32.xlu0 %v412, 32
        %v414 = vpop.permute.xlu0 %413
        %vm416 = vcmask 254976
        %417 = vst.msk [vmem:[#allocation5] sm:$0x3] %vm416, %v414
        %v420 = vunpack.c.l.s4 1983009808
        %v421 = vunpack.c.0.s8 %v420
        %v422 = vlaneseq
        %v423 = vshrl.u32 %v422, 7
        %v424 = vsub.s32 %v421, %v423
        %v425 = vrot.slane %v398, %v424
        %426 = vrot.lane.b32.xlu0 %v425, 96
        %v427 = vpop.permute.xlu0 %426
        %429 = vst.msk [vmem:[#allocation7] sm:$0x3] %vm416, %v427
        %s430 = scalar_lea.vmem [#allocation5], 2
        %v431 = vld [vmem:[%s430] sm:$0x3]
        %433 = vrot.lane.b32.xlu0 %v431, 32
        %v434 = vpop.permute.xlu0 %433
        %v436 = vsel %vm324, %v414, %v434
        %v437 = vpack.c.bf16 %v436, %v436
        %vm438 = vcmask 523264
        %v440 = vsel %vm438, %v437, 0
        %442 = vmatprep.subr.bf16.mxu0 0
        %443 = vmatpush1.bf16.msra.mxu0 %v310
        %444 = vmatprep.subr.bf16.mxu0 0
        %445 = vmatpush1.bf16.msra.mxu0 %v311
        %446 = vmatprep.subr.bf16.mxu0 0
        %447 = vmatpush1.bf16.msra.mxu0 %v312
        %448 = vmatprep.subr.bf16.mxu0 0
        %449 = vmatpush1.bf16.msra.mxu0 %v313
        %450 = vmatprep.subr.bf16.mxu0 0
        %451 = vmatpush1.bf16.msra.mxu0 0
        %452 = vmatprep.subr.bf16.mxu0 0
        %453 = vmatpush1.bf16.msra.mxu0 0
        %454 = vmatprep.subr.bf16.mxu0 0
        %455 = vmatpush1.bf16.msra.mxu0 0
        %456 = vmatprep.subr.bf16.mxu0 0
        %457 = vmatpush1.bf16.msra.mxu0 0
        %458 = vmatprep.subr.bf16.mxu0 0
        %459 = vmatpush1.bf16.msra.mxu0 0
        %460 = vmatprep.subr.bf16.mxu0 0
        %461 = vmatpush1.bf16.msra.mxu0 0
        %462 = vmatprep.subr.bf16.mxu0 0
        %463 = vmatpush1.bf16.msra.mxu0 0
        %464 = vmatprep.subr.bf16.mxu0 0
        %465 = vmatpush1.bf16.msra.mxu0 0
        %466 = vmatprep.subr.bf16.mxu0 0
        %467 = vmatpush1.bf16.msra.mxu0 0
        %468 = vmatprep.subr.bf16.mxu0 0
        %469 = vmatpush1.bf16.msra.mxu0 0
        %470 = vmatprep.subr.bf16.mxu0 0
        %471 = vmatpush1.bf16.msra.mxu0 0
        %472 = vmatprep.subr.bf16.mxu0 0
        %473 = vmatpush1.bf16.msra.mxu0 0
        %474 = vmatprep.mubr.bf16.mxu0 0
        %475 = vmatmul.mubr.bf16.gmra.mrb[0].mxu0 %v440
        %v476 = vpop.f32.mrb[0].mxu0
        %v477 = vadd.f32 %v319, %v476
        %v478 = vpop.f32.mrb[0].mxu0
        %v479 = vpop.f32.mrb[0].mxu0
        %v480 = vpop.f32.mrb[0].mxu0
        %481 = vdwg.mxu0
        %s482 = scalar_lea.vmem [#allocation7], 2
        %v483 = vld [vmem:[%s482] sm:$0x3]
        %v484 = vxor.u32 %v477, 2147483648
        %v485 = vmul.f32 %v484, 1.442695
        %v486 = vpow.pop %v485
        %v487 = vadd.f32 %v486, 1.0
        %v488 = vrcp.pop %v487
        %v489 = vmul.f32 1.0, %v488
        %v490 = vtanh.pop %v477
        %492 = vrot.lane.b32.xlu0 %v483, 32
        %v493 = vpop.permute.xlu0 %492
        %v495 = vmul.f32 %v489, %v493
        %497 = vrot.lane.b32.xlu0 %v490, 64
        %v498 = vpop.permute.xlu0 %497
        %v500 = vmul.f32 %v489, %v498
        %502 = vrot.lane.b32.xlu0 %v500, 32
        %v503 = vpop.permute.xlu0 %502
        %v505 = vadd.f32 %v495, %v503
        %v506 = vtanh.pop %v505
        %508 = vrot.lane.b32.xlu0 %v506, 64
        %v509 = vpop.permute.xlu0 %508
        %v511 = vmul.f32 %v489, %v509
        %513 = vrot.lane.b32.xlu0 %v511, 32
        %v514 = vpop.permute.xlu0 %513
        %516 = vst.msk [vmem:[%s430] sm:$0x3] %vm416, %v514
        %518 = vrot.lane.b32.xlu0 %v505, 96
        %v519 = vpop.permute.xlu0 %518
        %521 = vst.msk [vmem:[%s482] sm:$0x3] %vm416, %v519
        %522 = vst.msk [vmem:[%s196] sm:$0x3] %vm416, %v514
        %v523 = vld [vmem:[%s191 + $0x2] sm:$0x3]
        %v524 = vld [vmem:[#allocation5] sm:$0x3]
        %v525 = vpack.c.bf16 %v524, %v524
        %v527 = vsel %vm324, %v525, 0
        %529 = vmatprep.subr.bf16.mxu0 0
        %530 = vmatpush1.bf16.msra.mxu0 %v308
        %531 = vmatprep.subr.bf16.mxu0 0
        %532 = vmatpush1.bf16.msra.mxu0 %v309
        %533 = vmatprep.subr.bf16.mxu0 0
        %534 = vmatpush1.bf16.msra.mxu0 0
        %535 = vmatprep.subr.bf16.mxu0 0
        %536 = vmatpush1.bf16.msra.mxu0 0
        %537 = vmatprep.subr.bf16.mxu0 0
        %538 = vmatpush1.bf16.msra.mxu0 0
        %539 = vmatprep.subr.bf16.mxu0 0
        %540 = vmatpush1.bf16.msra.mxu0 0
        %541 = vmatprep.subr.bf16.mxu0 0
        %542 = vmatpush1.bf16.msra.mxu0 0
        %543 = vmatprep.subr.bf16.mxu0 0
        %544 = vmatpush1.bf16.msra.mxu0 0
        %545 = vmatprep.subr.bf16.mxu0 0
        %546 = vmatpush1.bf16.msra.mxu0 0
        %547 = vmatprep.subr.bf16.mxu0 0
        %548 = vmatpush1.bf16.msra.mxu0 0
        %549 = vmatprep.subr.bf16.mxu0 0
        %550 = vmatpush1.bf16.msra.mxu0 0
        %551 = vmatprep.subr.bf16.mxu0 0
        %552 = vmatpush1.bf16.msra.mxu0 0
        %553 = vmatprep.subr.bf16.mxu0 0
        %554 = vmatpush1.bf16.msra.mxu0 0
        %555 = vmatprep.subr.bf16.mxu0 0
        %556 = vmatpush1.bf16.msra.mxu0 0
        %557 = vmatprep.subr.bf16.mxu0 0
        %558 = vmatpush1.bf16.msra.mxu0 0
        %559 = vmatprep.subr.bf16.mxu0 0
        %560 = vmatpush1.bf16.msra.mxu0 0
        %561 = vmatprep.mubr.bf16.mxu0 0
        %562 = vmatmul.mubr.bf16.gmra.mrb[0].mxu0 %v527
        %v563 = vpop.f32.mrb[0].mxu0
        %v564 = vadd.f32 0.0, %v563
        %v565 = vpop.f32.mrb[0].mxu0
        %v566 = vpop.f32.mrb[0].mxu0
        %v567 = vpop.f32.mrb[0].mxu0
        %568 = vdwg.mxu0
        %v569 = vadd.f32 %v523, %v564
        %v570 = vld [vmem:[#allocation7] sm:$0x3]
        %v571 = vxor.u32 %v569, 2147483648
        %v572 = vmul.f32 %v571, 1.442695
        %v573 = vpow.pop %v572
        %v574 = vadd.f32 %v573, 1.0
        %v575 = vrcp.pop %v574
        %v576 = vmul.f32 1.0, %v575
        %v577 = vtanh.pop %v569
        %v580 = vunpack.c.l.s4 1983009808
        %v581 = vunpack.c.0.s8 %v580
        %v582 = vlaneseq
        %v583 = vshrl.u32 %v582, 7
        %v584 = vsub.s32 %v581, %v583
        %v585 = vrot.slane %v570, %v584
        %586 = vrot.lane.b32.xlu0 %v585, 32
        %v587 = vpop.permute.xlu0 %586
        %v589 = vmul.f32 %v576, %v587
        %591 = vrot.lane.b32.xlu0 %v577, 64
        %v592 = vpop.permute.xlu0 %591
        %v594 = vmul.f32 %v576, %v592
        %596 = vrot.lane.b32.xlu0 %v594, 32
        %v597 = vpop.permute.xlu0 %596
        %v599 = vadd.f32 %v589, %v597
        %v600 = vtanh.pop %v599
        %602 = vrot.lane.b32.xlu0 %v600, 64
        %v603 = vpop.permute.xlu0 %602
        %v605 = vmul.f32 %v576, %v603
        %v608 = vunpack.c.l.s4 1983009808
        %v609 = vunpack.c.0.s8 %v608
        %v610 = vlaneseq
        %v611 = vshrl.u32 %v610, 7
        %v612 = vsub.s32 %v609, %v611
        %v613 = vrot.slane %v605, %v612
        %614 = vrot.lane.b32.xlu0 %v613, 32
        %v615 = vpop.permute.xlu0 %614
        %617 = vst.msk [vmem:[#allocation5] sm:$0x3] %vm416, %v615
        %v620 = vunpack.c.l.s4 1983009808
        %v621 = vunpack.c.0.s8 %v620
        %v622 = vlaneseq
        %v623 = vshrl.u32 %v622, 7
        %v624 = vsub.s32 %v621, %v623
        %v625 = vrot.slane %v599, %v624
        %626 = vrot.lane.b32.xlu0 %v625, 96
        %v627 = vpop.permute.xlu0 %626
        %629 = vst.msk [vmem:[#allocation7] sm:$0x3] %vm416, %v627
        %v630 = vld [vmem:[%s430] sm:$0x3]
        %632 = vrot.lane.b32.xlu0 %v630, 32
        %v633 = vpop.permute.xlu0 %632
        %v635 = vsel %vm324, %v615, %v633
        %v636 = vpack.c.bf16 %v635, %v635
        %v638 = vsel %vm438, %v636, 0
        %640 = vmatprep.subr.bf16.mxu0 0
        %641 = vmatpush1.bf16.msra.mxu0 %v310
        %642 = vmatprep.subr.bf16.mxu0 0
        %643 = vmatpush1.bf16.msra.mxu0 %v311
        %644 = vmatprep.subr.bf16.mxu0 0
        %645 = vmatpush1.bf16.msra.mxu0 %v312
        %646 = vmatprep.subr.bf16.mxu0 0
        %647 = vmatpush1.bf16.msra.mxu0 %v313
        %648 = vmatprep.subr.bf16.mxu0 0
        %649 = vmatpush1.bf16.msra.mxu0 0
        %650 = vmatprep.subr.bf16.mxu0 0
        %651 = vmatpush1.bf16.msra.mxu0 0
        %652 = vmatprep.subr.bf16.mxu0 0
        %653 = vmatpush1.bf16.msra.mxu0 0
        %654 = vmatprep.subr.bf16.mxu0 0
        %655 = vmatpush1.bf16.msra.mxu0 0
        %656 = vmatprep.subr.bf16.mxu0 0
        %657 = vmatpush1.bf16.msra.mxu0 0
        %658 = vmatprep.subr.bf16.mxu0 0
        %659 = vmatpush1.bf16.msra.mxu0 0
        %660 = vmatprep.subr.bf16.mxu0 0
        %661 = vmatpush1.bf16.msra.mxu0 0
        %662 = vmatprep.subr.bf16.mxu0 0
        %663 = vmatpush1.bf16.msra.mxu0 0
        %664 = vmatprep.subr.bf16.mxu0 0
        %665 = vmatpush1.bf16.msra.mxu0 0
        %666 = vmatprep.subr.bf16.mxu0 0
        %667 = vmatpush1.bf16.msra.mxu0 0
        %668 = vmatprep.subr.bf16.mxu0 0
        %669 = vmatpush1.bf16.msra.mxu0 0
        %670 = vmatprep.subr.bf16.mxu0 0
        %671 = vmatpush1.bf16.msra.mxu0 0
        %672 = vmatprep.mubr.bf16.mxu0 0
        %673 = vmatmul.mubr.bf16.gmra.mrb[0].mxu0 %v638
        %v674 = vpop.f32.mrb[0].mxu0
        %v675 = vadd.f32 %v319, %v674
        %v676 = vpop.f32.mrb[0].mxu0
        %v677 = vpop.f32.mrb[0].mxu0
        %v678 = vpop.f32.mrb[0].mxu0
        %679 = vdwg.mxu0
        %v680 = vld [vmem:[%s482] sm:$0x3]
        %v681 = vxor.u32 %v675, 2147483648
        %v682 = vmul.f32 %v681, 1.442695
        %v683 = vpow.pop %v682
        %v684 = vadd.f32 %v683, 1.0
        %v685 = vrcp.pop %v684
        %v686 = vmul.f32 1.0, %v685
        %v687 = vtanh.pop %v675
        %689 = vrot.lane.b32.xlu0 %v680, 32
        %v690 = vpop.permute.xlu0 %689
        %v692 = vmul.f32 %v686, %v690
        %694 = vrot.lane.b32.xlu0 %v687, 64
        %v695 = vpop.permute.xlu0 %694
        %v697 = vmul.f32 %v686, %v695
        %699 = vrot.lane.b32.xlu0 %v697, 32
        %v700 = vpop.permute.xlu0 %699
        %v702 = vadd.f32 %v692, %v700
        %v703 = vtanh.pop %v702
        %705 = vrot.lane.b32.xlu0 %v703, 64
        %v706 = vpop.permute.xlu0 %705
        %v708 = vmul.f32 %v686, %v706
        %710 = vrot.lane.b32.xlu0 %v708, 32
        %v711 = vpop.permute.xlu0 %710
        %713 = vst.msk [vmem:[%s430] sm:$0x3] %vm416, %v711
        %715 = vrot.lane.b32.xlu0 %v702, 96
        %v716 = vpop.permute.xlu0 %715
        %718 = vst.msk [vmem:[%s482] sm:$0x3] %vm416, %v716
        %719 = vrot.lane.b32.xlu0 %v708, 64
        %v720 = vpop.permute.xlu0 %719
        %vm722 = vcmask 517376
        %723 = vst.msk [vmem:[%s196] sm:$0x3] %vm722, %v720
        %v724 = vld [vmem:[%s191 + $0x4] sm:$0x3]
        %v725 = vld [vmem:[#allocation5] sm:$0x3]
        %v726 = vpack.c.bf16 %v725, %v725
        %v728 = vsel %vm324, %v726, 0
        %730 = vmatprep.subr.bf16.mxu0 0
        %731 = vmatpush1.bf16.msra.mxu0 %v308
        %732 = vmatprep.subr.bf16.mxu0 0
        %733 = vmatpush1.bf16.msra.mxu0 %v309
        %734 = vmatprep.subr.bf16.mxu0 0
        %735 = vmatpush1.bf16.msra.mxu0 0
        %736 = vmatprep.subr.bf16.mxu0 0
        %737 = vmatpush1.bf16.msra.mxu0 0
        %738 = vmatprep.subr.bf16.mxu0 0
        %739 = vmatpush1.bf16.msra.mxu0 0
        %740 = vmatprep.subr.bf16.mxu0 0
        %741 = vmatpush1.bf16.msra.mxu0 0
        %742 = vmatprep.subr.bf16.mxu0 0
        %743 = vmatpush1.bf16.msra.mxu0 0
        %744 = vmatprep.subr.bf16.mxu0 0
        %745 = vmatpush1.bf16.msra.mxu0 0
        %746 = vmatprep.subr.bf16.mxu0 0
        %747 = vmatpush1.bf16.msra.mxu0 0
        %748 = vmatprep.subr.bf16.mxu0 0
        %749 = vmatpush1.bf16.msra.mxu0 0
        %750 = vmatprep.subr.bf16.mxu0 0
        %751 = vmatpush1.bf16.msra.mxu0 0
        %752 = vmatprep.subr.bf16.mxu0 0
        %753 = vmatpush1.bf16.msra.mxu0 0
        %754 = vmatprep.subr.bf16.mxu0 0
        %755 = vmatpush1.bf16.msra.mxu0 0
        %756 = vmatprep.subr.bf16.mxu0 0
        %757 = vmatpush1.bf16.msra.mxu0 0
        %758 = vmatprep.subr.bf16.mxu0 0
        %759 = vmatpush1.bf16.msra.mxu0 0
        %760 = vmatprep.subr.bf16.mxu0 0
        %761 = vmatpush1.bf16.msra.mxu0 0
        %762 = vmatprep.mubr.bf16.mxu0 0
        %763 = vmatmul.mubr.bf16.gmra.mrb[0].mxu0 %v728
        %v764 = vpop.f32.mrb[0].mxu0
        %v765 = vadd.f32 0.0, %v764
        %v766 = vpop.f32.mrb[0].mxu0
        %v767 = vpop.f32.mrb[0].mxu0
        %v768 = vpop.f32.mrb[0].mxu0
        %769 = vdwg.mxu0
        %v770 = vadd.f32 %v724, %v765
        %v771 = vld [vmem:[#allocation7] sm:$0x3]
        %v772 = vxor.u32 %v770, 2147483648
        %v773 = vmul.f32 %v772, 1.442695
        %v774 = vpow.pop %v773
        %v775 = vadd.f32 %v774, 1.0
        %v776 = vrcp.pop %v775
        %v777 = vmul.f32 1.0, %v776
        %v778 = vtanh.pop %v770
        %v781 = vunpack.c.l.s4 1983009808
        %v782 = vunpack.c.0.s8 %v781
        %v783 = vlaneseq
        %v784 = vshrl.u32 %v783, 7
        %v785 = vsub.s32 %v782, %v784
        %v786 = vrot.slane %v771, %v785
        %787 = vrot.lane.b32.xlu0 %v786, 32
        %v788 = vpop.permute.xlu0 %787
        %v790 = vmul.f32 %v777, %v788
        %792 = vrot.lane.b32.xlu0 %v778, 64
        %v793 = vpop.permute.xlu0 %792
        %v795 = vmul.f32 %v777, %v793
        %797 = vrot.lane.b32.xlu0 %v795, 32
        %v798 = vpop.permute.xlu0 %797
        %v800 = vadd.f32 %v790, %v798
        %v801 = vtanh.pop %v800
        %803 = vrot.lane.b32.xlu0 %v801, 64
        %v804 = vpop.permute.xlu0 %803
        %v806 = vmul.f32 %v777, %v804
        %v809 = vunpack.c.l.s4 1983009808
        %v810 = vunpack.c.0.s8 %v809
        %v811 = vlaneseq
        %v812 = vshrl.u32 %v811, 7
        %v813 = vsub.s32 %v810, %v812
        %v814 = vrot.slane %v806, %v813
        %815 = vrot.lane.b32.xlu0 %v814, 32
        %v816 = vpop.permute.xlu0 %815
        %818 = vst.msk [vmem:[#allocation5] sm:$0x3] %vm416, %v816
        %v821 = vunpack.c.l.s4 1983009808
        %v822 = vunpack.c.0.s8 %v821
        %v823 = vlaneseq
        %v824 = vshrl.u32 %v823, 7
        %v825 = vsub.s32 %v822, %v824
        %v826 = vrot.slane %v800, %v825
        %827 = vrot.lane.b32.xlu0 %v826, 96
        %v828 = vpop.permute.xlu0 %827
        %830 = vst.msk [vmem:[#allocation7] sm:$0x3] %vm416, %v828
        %v831 = vld [vmem:[%s430] sm:$0x3]
        %833 = vrot.lane.b32.xlu0 %v831, 32
        %v834 = vpop.permute.xlu0 %833
        %v836 = vsel %vm324, %v816, %v834
        %v837 = vpack.c.bf16 %v836, %v836
        %v839 = vsel %vm438, %v837, 0
        %841 = vmatprep.subr.bf16.mxu0 0
        %842 = vmatpush1.bf16.msra.mxu0 %v310
        %843 = vmatprep.subr.bf16.mxu0 0
        %844 = vmatpush1.bf16.msra.mxu0 %v311
        %845 = vmatprep.subr.bf16.mxu0 0
        %846 = vmatpush1.bf16.msra.mxu0 %v312
        %847 = vmatprep.subr.bf16.mxu0 0
        %848 = vmatpush1.bf16.msra.mxu0 %v313
        %849 = vmatprep.subr.bf16.mxu0 0
        %850 = vmatpush1.bf16.msra.mxu0 0
        %851 = vmatprep.subr.bf16.mxu0 0
        %852 = vmatpush1.bf16.msra.mxu0 0
        %853 = vmatprep.subr.bf16.mxu0 0
        %854 = vmatpush1.bf16.msra.mxu0 0
        %855 = vmatprep.subr.bf16.mxu0 0
        %856 = vmatpush1.bf16.msra.mxu0 0
        %857 = vmatprep.subr.bf16.mxu0 0
        %858 = vmatpush1.bf16.msra.mxu0 0
        %859 = vmatprep.subr.bf16.mxu0 0
        %860 = vmatpush1.bf16.msra.mxu0 0
        %861 = vmatprep.subr.bf16.mxu0 0
        %862 = vmatpush1.bf16.msra.mxu0 0
        %863 = vmatprep.subr.bf16.mxu0 0
        %864 = vmatpush1.bf16.msra.mxu0 0
        %865 = vmatprep.subr.bf16.mxu0 0
        %866 = vmatpush1.bf16.msra.mxu0 0
        %867 = vmatprep.subr.bf16.mxu0 0
        %868 = vmatpush1.bf16.msra.mxu0 0
        %869 = vmatprep.subr.bf16.mxu0 0
        %870 = vmatpush1.bf16.msra.mxu0 0
        %871 = vmatprep.subr.bf16.mxu0 0
        %872 = vmatpush1.bf16.msra.mxu0 0
        %873 = vmatprep.mubr.bf16.mxu0 0
        %874 = vmatmul.mubr.bf16.gmra.mrb[0].mxu0 %v839
        %v875 = vpop.f32.mrb[0].mxu0
        %v876 = vadd.f32 %v319, %v875
        %v877 = vpop.f32.mrb[0].mxu0
        %v878 = vpop.f32.mrb[0].mxu0
        %v879 = vpop.f32.mrb[0].mxu0
        %880 = vdwg.mxu0
        %v881 = vld [vmem:[%s482] sm:$0x3]
        %v882 = vxor.u32 %v876, 2147483648
        %v883 = vmul.f32 %v882, 1.442695
        %v884 = vpow.pop %v883
        %v885 = vadd.f32 %v884, 1.0
        %v886 = vrcp.pop %v885
        %v887 = vmul.f32 1.0, %v886
        %v888 = vtanh.pop %v876
        %890 = vrot.lane.b32.xlu0 %v881, 32
        %v891 = vpop.permute.xlu0 %890
        %v893 = vmul.f32 %v887, %v891
        %895 = vrot.lane.b32.xlu0 %v888, 64
        %v896 = vpop.permute.xlu0 %895
        %v898 = vmul.f32 %v887, %v896
        %900 = vrot.lane.b32.xlu0 %v898, 32
        %v901 = vpop.permute.xlu0 %900
        %v903 = vadd.f32 %v893, %v901
        %v904 = vtanh.pop %v903
        %906 = vrot.lane.b32.xlu0 %v904, 64
        %v907 = vpop.permute.xlu0 %906
        %v909 = vmul.f32 %v887, %v907
        %911 = vrot.lane.b32.xlu0 %v909, 32
        %v912 = vpop.permute.xlu0 %911
        %914 = vst.msk [vmem:[%s430] sm:$0x3] %vm416, %v912
        %916 = vrot.lane.b32.xlu0 %v903, 96
        %v917 = vpop.permute.xlu0 %916
        %919 = vst.msk [vmem:[%s482] sm:$0x3] %vm416, %v917
        %920 = vrot.lane.b32.xlu0 %v909, 96
        %v921 = vpop.permute.xlu0 %920
        %vm923 = vcmask 779776
        %924 = vst.msk [vmem:[%s196] sm:$0x3] %vm923, %v921
        %v925 = vld [vmem:[%s191 + $0x6] sm:$0x3]
        %v926 = vld [vmem:[#allocation5] sm:$0x3]
        %v927 = vpack.c.bf16 %v926, %v926
        %v929 = vsel %vm324, %v927, 0
        %931 = vmatprep.subr.bf16.mxu0 0
        %932 = vmatpush1.bf16.msra.mxu0 %v308
        %933 = vmatprep.subr.bf16.mxu0 0
        %934 = vmatpush1.bf16.msra.mxu0 %v309
        %935 = vmatprep.subr.bf16.mxu0 0
        %936 = vmatpush1.bf16.msra.mxu0 0
        %937 = vmatprep.subr.bf16.mxu0 0
        %938 = vmatpush1.bf16.msra.mxu0 0
        %939 = vmatprep.subr.bf16.mxu0 0
        %940 = vmatpush1.bf16.msra.mxu0 0
        %941 = vmatprep.subr.bf16.mxu0 0
        %942 = vmatpush1.bf16.msra.mxu0 0
        %943 = vmatprep.subr.bf16.mxu0 0
        %944 = vmatpush1.bf16.msra.mxu0 0
        %945 = vmatprep.subr.bf16.mxu0 0
        %946 = vmatpush1.bf16.msra.mxu0 0
        %947 = vmatprep.subr.bf16.mxu0 0
        %948 = vmatpush1.bf16.msra.mxu0 0
        %949 = vmatprep.subr.bf16.mxu0 0
        %950 = vmatpush1.bf16.msra.mxu0 0
        %951 = vmatprep.subr.bf16.mxu0 0
        %952 = vmatpush1.bf16.msra.mxu0 0
        %953 = vmatprep.subr.bf16.mxu0 0
        %954 = vmatpush1.bf16.msra.mxu0 0
        %955 = vmatprep.subr.bf16.mxu0 0
        %956 = vmatpush1.bf16.msra.mxu0 0
        %957 = vmatprep.subr.bf16.mxu0 0
        %958 = vmatpush1.bf16.msra.mxu0 0
        %959 = vmatprep.subr.bf16.mxu0 0
        %960 = vmatpush1.bf16.msra.mxu0 0
        %961 = vmatprep.subr.bf16.mxu0 0
        %962 = vmatpush1.bf16.msra.mxu0 0
        %963 = vmatprep.mubr.bf16.mxu0 0
        %964 = vmatmul.mubr.bf16.gmra.mrb[0].mxu0 %v929
        %v965 = vpop.f32.mrb[0].mxu0
        %v966 = vadd.f32 0.0, %v965
        %v967 = vpop.f32.mrb[0].mxu0
        %v968 = vpop.f32.mrb[0].mxu0
        %v969 = vpop.f32.mrb[0].mxu0
        %970 = vdwg.mxu0
        %v971 = vadd.f32 %v925, %v966
        %v972 = vld [vmem:[#allocation7] sm:$0x3]
        %v973 = vxor.u32 %v971, 2147483648
        %v974 = vmul.f32 %v973, 1.442695
        %v975 = vpow.pop %v974
        %v976 = vadd.f32 %v975, 1.0
        %v977 = vrcp.pop %v976
        %v978 = vmul.f32 1.0, %v977
        %v979 = vtanh.pop %v971
        %v982 = vunpack.c.l.s4 1983009808
        %v983 = vunpack.c.0.s8 %v982
        %v984 = vlaneseq
        %v985 = vshrl.u32 %v984, 7
        %v986 = vsub.s32 %v983, %v985
        %v987 = vrot.slane %v972, %v986
        %988 = vrot.lane.b32.xlu0 %v987, 32
        %v989 = vpop.permute.xlu0 %988
        %v991 = vmul.f32 %v978, %v989
        %993 = vrot.lane.b32.xlu0 %v979, 64
        %v994 = vpop.permute.xlu0 %993
        %v996 = vmul.f32 %v978, %v994
        %998 = vrot.lane.b32.xlu0 %v996, 32
        %v999 = vpop.permute.xlu0 %998
        %v1001 = vadd.f32 %v991, %v999
        %v1002 = vtanh.pop %v1001
        %1004 = vrot.lane.b32.xlu0 %v1002, 64
        %v1005 = vpop.permute.xlu0 %1004
        %v1007 = vmul.f32 %v978, %v1005
        %v1010 = vunpack.c.l.s4 1983009808
        %v1011 = vunpack.c.0.s8 %v1010
        %v1012 = vlaneseq
        %v1013 = vshrl.u32 %v1012, 7
        %v1014 = vsub.s32 %v1011, %v1013
        %v1015 = vrot.slane %v1007, %v1014
        %1016 = vrot.lane.b32.xlu0 %v1015, 32
        %v1017 = vpop.permute.xlu0 %1016
        %1019 = vst.msk [vmem:[#allocation5] sm:$0x3] %vm416, %v1017
        %v1022 = vunpack.c.l.s4 1983009808
        %v1023 = vunpack.c.0.s8 %v1022
        %v1024 = vlaneseq
        %v1025 = vshrl.u32 %v1024, 7
        %v1026 = vsub.s32 %v1023, %v1025
        %v1027 = vrot.slane %v1001, %v1026
        %1028 = vrot.lane.b32.xlu0 %v1027, 96
        %v1029 = vpop.permute.xlu0 %1028
        %1031 = vst.msk [vmem:[#allocation7] sm:$0x3] %vm416, %v1029
        %v1032 = vld [vmem:[%s430] sm:$0x3]
        %1034 = vrot.lane.b32.xlu0 %v1032, 32
        %v1035 = vpop.permute.xlu0 %1034
        %v1037 = vsel %vm324, %v1017, %v1035
        %v1038 = vpack.c.bf16 %v1037, %v1037
        %v1040 = vsel %vm438, %v1038, 0
        %1042 = vmatprep.subr.bf16.mxu0 0
        %1043 = vmatpush1.bf16.msra.mxu0 %v310
        %1044 = vmatprep.subr.bf16.mxu0 0
        %1045 = vmatpush1.bf16.msra.mxu0 %v311
        %1046 = vmatprep.subr.bf16.mxu0 0
        %1047 = vmatpush1.bf16.msra.mxu0 %v312
        %1048 = vmatprep.subr.bf16.mxu0 0
        %1049 = vmatpush1.bf16.msra.mxu0 %v313
        %1050 = vmatprep.subr.bf16.mxu0 0
        %1051 = vmatpush1.bf16.msra.mxu0 0
        %1052 = vmatprep.subr.bf16.mxu0 0
        %1053 = vmatpush1.bf16.msra.mxu0 0
        %1054 = vmatprep.subr.bf16.mxu0 0
        %1055 = vmatpush1.bf16.msra.mxu0 0
        %1056 = vmatprep.subr.bf16.mxu0 0
        %1057 = vmatpush1.bf16.msra.mxu0 0
        %1058 = vmatprep.subr.bf16.mxu0 0
        %1059 = vmatpush1.bf16.msra.mxu0 0
        %1060 = vmatprep.subr.bf16.mxu0 0
        %1061 = vmatpush1.bf16.msra.mxu0 0
        %1062 = vmatprep.subr.bf16.mxu0 0
        %1063 = vmatpush1.bf16.msra.mxu0 0
        %1064 = vmatprep.subr.bf16.mxu0 0
        %1065 = vmatpush1.bf16.msra.mxu0 0
        %1066 = vmatprep.subr.bf16.mxu0 0
        %1067 = vmatpush1.bf16.msra.mxu0 0
        %1068 = vmatprep.subr.bf16.mxu0 0
        %1069 = vmatpush1.bf16.msra.mxu0 0
        %1070 = vmatprep.subr.bf16.mxu0 0
        %1071 = vmatpush1.bf16.msra.mxu0 0
        %1072 = vmatprep.subr.bf16.mxu0 0
        %1073 = vmatpush1.bf16.msra.mxu0 0
        %1074 = vmatprep.mubr.bf16.mxu0 0
        %1075 = vmatmul.mubr.bf16.gmra.mrb[0].mxu0 %v1040
        %v1076 = vpop.f32.mrb[0].mxu0
        %v1077 = vadd.f32 %v319, %v1076
        %v1078 = vpop.f32.mrb[0].mxu0
        %v1079 = vpop.f32.mrb[0].mxu0
        %v1080 = vpop.f32.mrb[0].mxu0
        %1081 = vdwg.mxu0
        %v1082 = vld [vmem:[%s482] sm:$0x3]
        %v1083 = vxor.u32 %v1077, 2147483648
        %v1084 = vmul.f32 %v1083, 1.442695
        %v1085 = vpow.pop %v1084
        %v1086 = vadd.f32 %v1085, 1.0
        %v1087 = vrcp.pop %v1086
        %v1088 = vmul.f32 1.0, %v1087
        %v1089 = vtanh.pop %v1077
        %1091 = vrot.lane.b32.xlu0 %v1082, 32
        %v1092 = vpop.permute.xlu0 %1091
        %v1094 = vmul.f32 %v1088, %v1092
        %1096 = vrot.lane.b32.xlu0 %v1089, 64
        %v1097 = vpop.permute.xlu0 %1096
        %v1099 = vmul.f32 %v1088, %v1097
        %1101 = vrot.lane.b32.xlu0 %v1099, 32
        %v1102 = vpop.permute.xlu0 %1101
        %v1104 = vadd.f32 %v1094, %v1102
        %v1105 = vtanh.pop %v1104
        %1107 = vrot.lane.b32.xlu0 %v1105, 64
        %v1108 = vpop.permute.xlu0 %1107
        %v1110 = vmul.f32 %v1088, %v1108
        %1112 = vrot.lane.b32.xlu0 %v1110, 32
        %v1113 = vpop.permute.xlu0 %1112
        %1115 = vst.msk [vmem:[%s430] sm:$0x3] %vm416, %v1113
        %1117 = vrot.lane.b32.xlu0 %v1104, 96
        %v1118 = vpop.permute.xlu0 %1117
        %1120 = vst.msk [vmem:[%s482] sm:$0x3] %vm416, %v1118
        %vm1121 = vcmask 1042176
        %1122 = vst.msk [vmem:[%s196] sm:$0x3] %vm1121, %v1110
        %p1123 = scmp.lt.s32.totalorder %s20, 1
        %s1124 = scalar_select %p1123, %s20, 1
        %s1125 = smul.addr %s1124, 2
        %s1126 = scalar_lea.vmem %s4, %s1125
        // Predicated region
        $region101: #{attn_encoder_forward.1} parent=27 // pred_check
          %p1127 = pneg %p85
        $region102: #{attn_encoder_forward.1} parent=27 // pred_check_branch
          %1129 = sbr.rel (%p1127) target = $region104
        $region103: #{attn_encoder_forward.1} parent=27 // pred_region
          _
        $region104: #{attn_encoder_forward.1} parent=27 // pred_fallthru
          _
        // Predicated region
        $region105: #{attn_encoder_forward.1} parent=27 // pred_check
          %p1130 = pneg %p106
        $region106: #{attn_encoder_forward.1} parent=27 // pred_check_branch
          %1132 = sbr.rel (%p1130) target = $region108
        $region107: #{attn_encoder_forward.1} parent=27 // pred_region
          %s1134 = ssub.s32 64, 64
          %1135 = vsyncadd [#allocation6], %s1134
          %s1136 = sshll.u32 [#allocation5], 4
          %s1137 = int_to_ptr.vmem [resolvable:$true] %s1136
          %1142 = dma.vmem_to_hbm [thread:$0]  %s1137, 64, %s5, [#allocation6], 32, 32, 2
        $region108: #{attn_encoder_forward.1} parent=27 // pred_fallthru
          _
        // Predicated region
        $region109: #{attn_encoder_forward.1} parent=27 // pred_check
          %p1143 = pneg %p127
        $region110: #{attn_encoder_forward.1} parent=27 // pred_check_branch
          %1145 = sbr.rel (%p1143) target = $region112
        $region111: #{attn_encoder_forward.1} parent=27 // pred_region
          %s1147 = ssub.s32 64, 64
          %1148 = vsyncadd [#allocation8], %s1147
          %s1149 = sshll.u32 [#allocation7], 4
          %s1150 = int_to_ptr.vmem [resolvable:$true] %s1149
          %1155 = dma.vmem_to_hbm [thread:$0]  %s1150, 64, %s6, [#allocation8], 32, 32, 2
        $region112: #{attn_encoder_forward.1} parent=27 // pred_fallthru
          _
        // Predicated region
        $region113: #{attn_encoder_forward.1} parent=27 // pred_check
          %p1156 = pneg %p106
        $region114: #{attn_encoder_forward.1} parent=27 // pred_check_branch
          %1158 = sbr.rel (%p1156) target = $region116
        $region115: #{attn_encoder_forward.1} parent=27 // pred_region
          %1159 = dma.done [#allocation6], 64
        $region116: #{attn_encoder_forward.1} parent=27 // pred_fallthru
          _
        // Predicated region
        $region117: #{attn_encoder_forward.1} parent=27 // pred_check
          %p1160 = pneg %p127
        $region118: #{attn_encoder_forward.1} parent=27 // pred_check_branch
          %1162 = sbr.rel (%p1160) target = $region120
        $region119: #{attn_encoder_forward.1} parent=27 // pred_region
          %1163 = dma.done [#allocation8], 64
        $region120: #{attn_encoder_forward.1} parent=27 // pred_fallthru
          _
      $region28: #{attn_encoder_forward.1} parent=5 // pred_fallthru
        _
      %p1164 = scmp.le.s32.totalorder 2, %s15
      // Predicated region
      $region121: #{attn_encoder_forward.1} parent=5 // pred_check
        %p1165 = pneg %p1164
      $region122: #{attn_encoder_forward.1} parent=5 // pred_check_branch
        %1167 = sbr.rel (%p1165) target = $region124
      $region123: #{attn_encoder_forward.1} parent=5 // pred_region
        %s1168 = ssub.s32 %s15, 2
        // Predicated region
        $region125: #{attn_encoder_forward.1} parent=123 // pred_check
          %p1169 = pneg %p91
        $region126: #{attn_encoder_forward.1} parent=123 // pred_check_branch
          %1171 = sbr.rel (%p1169) target = $region128
        $region127: #{attn_encoder_forward.1} parent=123 // pred_region
          %p1172 = scmp.lt.s32.totalorder %s21, 1
          %s1173 = scalar_select %p1172, %s21, 1
          %s1174 = smul.addr %s1173, 2
          %s1175 = scalar_lea.vmem %s4, %s1174
        $region128: #{attn_encoder_forward.1} parent=123 // pred_fallthru
          _
      $region124: #{attn_encoder_forward.1} parent=5 // pred_fallthru
        _
    $region6: #{attn_encoder_forward.1} parent=1 // loop_footer
      %s19 = sadd.s32 1, %s15
    $region7: #{attn_encoder_forward.1} parent=1 // loop_footer_branch
      %14 = sbr.rel target = $region3
    $region8: #{attn_encoder_forward.1} parent=1 // loop_exit
      _
    %1176 = vsyncpa [#allocation6], 1
    %s1177 = scalar_lea.sflag [#allocation6], 1
    %1178 = vsyncpa %s1177, 1
    %1179 = vsyncpa [#allocation8], 1
  %1180 = vsyncmov [#allocation4]
  %s1181 = vpop.sfrf %1180
  %p1182 = scmp.eq.s32.totalorder %s1181, 0
  %p1183 = pneg %p1182
  %1185 = shalt.err (%p1183)
  %s1186 = scalar_lea.sflag [#allocation4], 1
  %1187 = vsyncmov %s1186
  %s1188 = vpop.sfrf %1187
  %p1189 = scmp.eq.s32.totalorder %s1188, 0
  %p1190 = pneg %p1189
  %1192 = shalt.err (%p1190)

</llo_original>
